<compile_context>
chip_gen: v7x
topology: tpu7x:2x2x1
jax: 0.10.0
libtpu: 0.0.40
codegen_flags: <defaults>
</compile_context>

<pallas_src>
import math
from functools import partial

import jax
import jax.numpy as jnp
from jax.experimental import pallas as pl
from jax.experimental.pallas import tpu as pltpu


# ----------------------------------------------------------------------------
# Pallas kernel: per-(batch, head) IPA attention core
# ----------------------------------------------------------------------------
def _ipa_attn_kernel(inf, qcat_ref, kcat_ref, vcat_ref, mrow_ref, mcol_ref,
                     z_ref, wb_ref, out_ref):
    h = pl.program_id(1)
    L = qcat_ref.shape[2]
    Cv = vcat_ref.shape[-1]
    Cz = z_ref.shape[1]
    Dpad = out_ref.shape[-1]
    Dout = Cv + Cz

    # Fused logits: scalar QK term + full point-distance term in ONE MXU matmul
    # (channel augmentation done in glue).  qcat [L, Ck] f32, kcat [Ck, L] f32
    # (pre-transposed in glue -> standard (M,K)x(K,N), lane-dense K operand).
    a = jnp.dot(qcat_ref[0, 0], kcat_ref[0, 0],
                preferred_element_type=jnp.float32)                  # [L, L]

    # Pair bias rebuilt in-kernel from the resident z tile:
    #   bias[i, j] = sqrt(1/3) * (sum_c z[i, j, c] * Wb[c, h] + bb[h])
    # wb_ref[h, :Cz] holds sqrt(1/3)*Wb[:, h]; wb_ref[h, Cz] holds sqrt(1/3)*bb[h].
    a = a + wb_ref[h, Cz]
    for c in range(Cz):
        a = a + wb_ref[h, c] * z_ref[0, c].astype(jnp.float32)       # VPU madd

    # mask bias inf*(m_i*m_j - 1) from two tiny mask vectors (no [L,L] stream)
    a = a + inf * (mcol_ref[0] * mrow_ref[0] - 1.0)

    # numerically stable softmax over keys; reciprocal goes to the EUP slot
    a = a - jnp.max(a, axis=-1, keepdims=True)
    e = jnp.exp(a)
    p = e * pl.reciprocal(jnp.sum(e, axis=-1, keepdims=True), approx=False)

    # fused aggregation: [o | o_pt] = p @ [v | v_pts]  (single MXU matmul)
    ov = jnp.dot(p.astype(vcat_ref.dtype), vcat_ref[0, 0],
                 preferred_element_type=jnp.float32)                 # [L, Cv]

    # o_pair[i, c] = sum_j p[i, j] * z[c, i, j]
    # per-channel VPU multiply + lane reduce over the key axis (z is laid out
    # [Cz, L, L] so the reduce is over lanes; no per-row MXU weight reloads)
    cols = []
    for c in range(Cz):
        cols.append(jnp.sum(p * z_ref[0, c].astype(jnp.float32),
                            axis=-1, keepdims=True))                 # [L, 1]
    opair = jnp.concatenate(cols, axis=-1)                           # [L, Cz]

    # direct sub-slab stores into the lane-dense padded output block
    out_ref[0, :, :Cv] = ov.astype(out_ref.dtype)
    out_ref[0, :, Cv:Dout] = opair.astype(out_ref.dtype)
    if Dpad > Dout:
        out_ref[0, :, Dout:] = jnp.zeros((L, Dpad - Dout), out_ref.dtype)


def ipa_attention_core(q, k, v, q_pts, k_pts, v_pts, mask, z_full, Wb, bb,
                       head_w, c_hidden, *, inf=1e5,
                       compute_dtype=jnp.bfloat16, vmem_limit_bytes=None):
    """Attention core.

    q/k/v: [B,H,L,C]; *_pts flattened [B,H,L,P*3]; mask: [B,L];
    z_full: [B,L,L,Cz]; Wb: [Cz,H]; bb: [H]; head_w: [H].
    Returns (o, o_pt, o_pair) in [B, L, H, *] layout, f32.
    """
    B, H, L, C = q.shape
    P3q = q_pts.shape[-1]
    P3v = v_pts.shape[-1]
    Cz = z_full.shape[-1]

    scale_qk = math.sqrt(1.0 / (3.0 * c_hidden))
    scale_b = math.sqrt(1.0 / 3.0)

    # --- channel augmentation so the point term rides the MXU (glue) ---------
    #   qcat = [scale_qk*q | sqrt(w_h)*q_pts | -0.5*w_h*||q_pts||^2 | 1]
    #   kcat = [k          | sqrt(w_h)*k_pts | 1 | -0.5*w_h*||k_pts||^2]
    # kept in f32 (norm channels are cancellation-prone at bf16).
    hw = head_w.astype(jnp.float32)[None, :, None, None]              # [1,H,1,1]
    sqrt_hw = jnp.sqrt(hw)
    q_sq = jnp.sum(q_pts * q_pts, axis=-1, keepdims=True)             # [B,H,L,1]
    k_sq = jnp.sum(k_pts * k_pts, axis=-1, keepdims=True)
    ones = jnp.ones_like(q_sq)

    qcat = jnp.concatenate(
        [q * scale_qk, q_pts * sqrt_hw, -0.5 * hw * q_sq, ones],
        axis=-1).astype(jnp.float32)                                   # [B,H,L,Ck]
    kcat_t = jnp.swapaxes(jnp.concatenate(
        [k, k_pts * sqrt_hw, ones, -0.5 * hw * k_sq],
        axis=-1).astype(jnp.float32), -1, -2)                          # [B,H,Ck,L]

    vcat = jnp.concatenate([v, v_pts], axis=-1).astype(compute_dtype)  # [B,H,L,Cv]

    # z laid out [B, Cz, L, L]: lane-dense key axis, no Cz->128 lane padding.
    z_t = jnp.transpose(z_full, (0, 3, 1, 2)).astype(compute_dtype)

    # per-head pair-bias weights (scale_b folded in), small SMEM table [H, Cz+1]
    wbp = jnp.concatenate(
        [Wb.T * scale_b, (bb * scale_b)[:, None]], axis=-1).astype(jnp.float32)

    m_row = mask.astype(jnp.float32).reshape(B, 1, L)
    m_col = mask.astype(jnp.float32).reshape(B, L, 1)

    Ck = C + P3q + 2
    Cv = C + P3v
    Dout = Cv + Cz
    Dpad = ((Dout + 127) // 128) * 128          # lane-dense padded output block

    kernel = partial(_ipa_attn_kernel, float(inf))

    # H axis marked "arbitrary" so megacore (v7x) shards over B and each core
    # keeps a single resident z copy.
    cp = dict(dimension_semantics=("parallel", "arbitrary"))
    if vmem_limit_bytes is not None:
        cp["vmem_limit_bytes"] = int(vmem_limit_bytes)

    out = pl.pallas_call(
        kernel,
        grid=(B, H),
        in_specs=[
            pl.BlockSpec((1, 1, L, Ck), lambda b, h: (b, h, 0, 0)),    # qcat
            pl.BlockSpec((1, 1, Ck, L), lambda b, h: (b, h, 0, 0)),    # kcat^T
            pl.BlockSpec((1, 1, L, Cv), lambda b, h: (b, h, 0, 0)),    # [v|v_pts]
            pl.BlockSpec((1, 1, L), lambda b, h: (b, 0, 0)),           # mask row
            pl.BlockSpec((1, L, 1), lambda b, h: (b, 0, 0)),           # mask col
            # z: block index depends only on b -> stays VMEM-resident across H
            pl.BlockSpec((1, Cz, L, L), lambda b, h: (b, 0, 0, 0)),
            # per-head bias weights: tiny table, whole array in SMEM
            pl.BlockSpec(memory_space=pltpu.MemorySpace.SMEM),
        ],
        # lane-dense padded output, written directly in [B, L, H*Dpad] layout
        out_specs=pl.BlockSpec((1, L, Dpad), lambda b, h: (b, 0, h)),
        out_shape=jax.ShapeDtypeStruct((B, L, H * Dpad), jnp.float32),
        compiler_params=pltpu.CompilerParams(**cp),
    )(qcat, kcat_t, vcat, m_row, m_col, z_t, wbp)

    out = out.reshape(B, L, H, Dpad)
    o = out[..., :C]                 # [B, L, H, C]
    o_pt = out[..., C:Cv]            # [B, L, H, Pv*3]
    o_pair = out[..., Cv:Dout]       # [B, L, H, Cz]
    return o, o_pt, o_pair


# ----------------------------------------------------------------------------
# Plain-JAX glue reproducing the PyTorch forward semantics
# ----------------------------------------------------------------------------
def quat_to_rot(quat):
    q = quat / jnp.linalg.norm(quat, axis=-1, keepdims=True)
    w, x, y, z = q[..., 0], q[..., 1], q[..., 2], q[..., 3]
    rot = jnp.stack([
        1 - 2 * (y * y + z * z), 2 * (x * y - w * z), 2 * (x * z + w * y),
        2 * (x * y + w * z), 1 - 2 * (x * x + z * z), 2 * (y * z - w * x),
        2 * (x * z - w * y), 2 * (y * z + w * x), 1 - 2 * (x * x + y * y),
    ], axis=-1)
    return rot.reshape(q.shape[:-1] + (3, 3))


def init_params(key, c_s, c_z, c_hidden, no_heads, no_qk_points, no_v_points):
    ks = jax.random.split(key, 12)
    hc = c_hidden * no_heads
    hpq = no_heads * no_qk_points * 3
    hpkv = no_heads * (no_qk_points + no_v_points) * 3
    concat_dim = no_heads * (c_z + c_hidden + no_v_points * 4)

    def lin(k, din, dout, scale=0.1):
        kw, kb = jax.random.split(k)
        return (scale * jax.random.normal(kw, (din, dout), jnp.float32),
                scale * jax.random.normal(kb, (dout,), jnp.float32))

    params = {
        "q": lin(ks[0], c_s, hc),
        "kv": lin(ks[1], c_s, 2 * hc),
        "q_pts": lin(ks[2], c_s, hpq),
        "kv_pts": lin(ks[3], c_s, hpkv),
        "b": lin(ks[4], c_z, no_heads),
        "out": lin(ks[5], concat_dim, c_s),
        # ipa_point_weights_init_: softplus^{-1}(1.0)
        "head_weights": jnp.full((no_heads,), math.log(math.e - 1.0), jnp.float32),
    }
    return params


def _prepare_inputs(params, s, z_nb, rot, trans, E_idx,
                    c_hidden, no_heads, no_qk_points, no_v_points, neighbor):
    """Projections + rigid apply + neighbor->dense scatter (plain JAX glue)."""
    B, L, _ = s.shape
    H, C, Pq, Pv = no_heads, c_hidden, no_qk_points, no_v_points
    Cz = z_nb.shape[-1]

    # scatter neighbor pair features into a full [B, L, L, Cz] matrix
    if L > neighbor:
        z_full = jnp.zeros((B, L, L, Cz), z_nb.dtype)
        b_idx = jnp.arange(B)[:, None, None]
        i_idx = jnp.arange(L)[None, :, None]
        z_full = z_full.at[b_idx, i_idx, E_idx].set(z_nb)
    else:
        z_full = z_nb

    Wq, bq = params["q"]
    Wkv, bkv = params["kv"]
    Wqp, bqp = params["q_pts"]
    Wkvp, bkvp = params["kv_pts"]

    q = (s @ Wq + bq).reshape(B, L, H, C).transpose(0, 2, 1, 3)          # [B,H,L,C]
    kv = (s @ Wkv + bkv).reshape(B, L, H, 2 * C)
    k = kv[..., :C].transpose(0, 2, 1, 3)
    v = kv[..., C:].transpose(0, 2, 1, 3)

    def to_points(raw):
        # split-in-3 then stack (x block | y block | z block layout)
        pts = jnp.stack(jnp.split(raw, 3, axis=-1), axis=-1)             # [B,L,P,3]
        return jnp.einsum("blij,blpj->blpi", rot, pts) + trans[:, :, None, :]

    q_pts = to_points(s @ Wqp + bqp).reshape(B, L, H, Pq, 3)
    kv_pts = to_points(s @ Wkvp + bkvp).reshape(B, L, H, Pq + Pv, 3)
    k_pts = kv_pts[..., :Pq, :]
    v_pts = kv_pts[..., Pq:, :]

    q_pts_f = q_pts.transpose(0, 2, 1, 3, 4).reshape(B, H, L, Pq * 3)
    k_pts_f = k_pts.transpose(0, 2, 1, 3, 4).reshape(B, H, L, Pq * 3)
    v_pts_f = v_pts.transpose(0, 2, 1, 3, 4).reshape(B, H, L, Pv * 3)

    head_w = (jax.nn.softplus(params["head_weights"])
              * math.sqrt(1.0 / (3.0 * (Pq * 9.0 / 2.0)))).astype(jnp.float32)

    return q, k, v, q_pts_f, k_pts_f, v_pts_f, z_full, head_w


def ipa_forward(params, s, z_nb, rot, trans, mask, E_idx,
                c_s, c_z, c_hidden, no_heads, no_qk_points, no_v_points,
                neighbor=30, inf=1e5, eps=1e-8, compute_dtype=jnp.bfloat16):
    B, L, _ = s.shape
    H, C, Pq, Pv = no_heads, c_hidden, no_qk_points, no_v_points

    (q, k, v, q_pts_f, k_pts_f, v_pts_f, z_full, head_w) = _prepare_inputs(
        params, s, z_nb, rot, trans, E_idx,
        c_hidden, no_heads, no_qk_points, no_v_points, neighbor)
    Cz = z_full.shape[-1]
    Wb, bb = params["b"]

    # kernel returns [B, L, H, *] directly (no post-kernel transpose needed)
    o_blh, opt_blh, opair_blh = ipa_attention_core(
        q, k, v, q_pts_f, k_pts_f, v_pts_f, mask, z_full, Wb, bb,
        head_w, c_hidden, inf=inf, compute_dtype=compute_dtype)

    Wo, bo = params["out"]

    o = o_blh.reshape(B, L, H * C)
    o_pt_g = opt_blh.reshape(B, L, H, Pv, 3)
    o_pair = opair_blh.reshape(B, L, H * Cz)

    # back into local frames: R^T (p - t)
    o_pt = jnp.einsum("blji,blhpj->blhpi",
                      rot, o_pt_g - trans[:, :, None, None, :])
    o_pt_norm = jnp.sqrt(jnp.sum(o_pt * o_pt, axis=-1) + eps).reshape(B, L, H * Pv)
    o_pt_flat = o_pt.reshape(B, L, H * Pv, 3)

    cat = jnp.concatenate(
        (o, o_pt_flat[..., 0], o_pt_flat[..., 1], o_pt_flat[..., 2],
         o_pt_norm, o_pair), axis=-1)
    return cat @ Wo + bo


# ----------------------------------------------------------------------------
# Pure-JAX reference of the attention core (direct-diff point term)
# ----------------------------------------------------------------------------
def attention_core_ref(q, k, v, q_pts, k_pts, v_pts, Wb, bb, mask, z_full,
                       head_w, c_hidden, inf=1e5):
    bias = (z_full @ Wb + bb).transpose(0, 3, 1, 2)                   # [B,H,L,L]
    a = jnp.einsum("bhic,bhjc->bhij", q, k) * math.sqrt(1.0 / (3.0 * c_hidden))
    a = a + math.sqrt(1.0 / 3.0) * bias
    diff = q_pts[:, :, :, None, :] - k_pts[:, :, None, :, :]
    pt = jnp.sum(diff * diff, axis=-1)
    a = a - 0.5 * head_w[None, :, None, None] * pt
    mask_bias = inf * (mask[:, :, None] * mask[:, None, :] - 1.0)
    a = a + mask_bias[:, None, :, :]
    p = jax.nn.softmax(a, axis=-1)
    o = jnp.einsum("bhij,bhjc->bhic", p, v)
    opt = jnp.einsum("bhij,bhjc->bhic", p, v_pts)
    opair = jnp.einsum("bhij,bijc->bhic", p, z_full)
    return o, opt, opair


# ----------------------------------------------------------------------------
if __name__ == "__main__":
    key = jax.random.PRNGKey(0)
    B, L = 2, 16
    c_s, c_z, c_hidden = 32, 16, 16
    no_heads, no_qk_points, no_v_points = 4, 4, 8
    neighbor = 8  # L > neighbor -> exercises the E_idx scatter path

    k_s, k_z, k_q, k_t, k_m, k_p = jax.random.split(key, 6)
    s = jax.random.normal(k_s, (B, L, c_s), jnp.float32)
    z_nb = jax.random.normal(k_z, (B, L, neighbor, c_z), jnp.float32)
    rot = quat_to_rot(jax.random.normal(k_q, (B, L, 4), jnp.float32))
    trans = jax.random.normal(k_t, (B, L, 3), jnp.float32)
    mask = jnp.ones((B, L), jnp.float32).at[1, -2:].set(0.0)
    # distinct neighbor indices per (b, i)
    E_idx = ((jnp.arange(L)[None, :, None] + 1 + jnp.arange(neighbor)[None, None, :])
             % L).astype(jnp.int32)
    E_idx = jnp.broadcast_to(E_idx, (B, L, neighbor))

    params = init_params(k_p, c_s, c_z, c_hidden, no_heads,
                         no_qk_points, no_v_points)

    # full forward pass (bf16 L^2 streams by default; f32 accumulation/output)
    out = ipa_forward(params, s, z_nb, rot, trans, mask, E_idx,
                      c_s, c_z, c_hidden, no_heads, no_qk_points, no_v_points,
                      neighbor=neighbor)
    out = jax.block_until_ready(out)
    assert out.shape == (B, L, c_s) and out.dtype == jnp.float32
    assert bool(jnp.all(jnp.isfinite(out)))

    # sanity check of the kernel core against a pure-JAX direct-diff reference
    (q, k, v, qpf, kpf, vpf, z_full, head_w) = _prepare_inputs(
        params, s, z_nb, rot, trans, E_idx,
        c_hidden, no_heads, no_qk_points, no_v_points, neighbor)
    Wb, bb = params["b"]

    want = attention_core_ref(q, k, v, qpf, kpf, vpf, Wb, bb, mask, z_full,
                              head_w, c_hidden, inf=1e5)
    want = tuple(w.transpose(0, 2, 1, 3) for w in want)   # -> [B, L, H, *]

    # f32 path (tight-ish tolerance; expansion vs direct-diff is f32-exact-ish)
    got32 = ipa_attention_core(q, k, v, qpf, kpf, vpf, mask, z_full, Wb, bb,
                               head_w, c_hidden, inf=1e5,
                               compute_dtype=jnp.float32)
    for g, w in zip(got32, want):
        assert g.shape == w.shape
        assert jnp.allclose(g, w, rtol=2e-3, atol=2e-3), "f32 kernel mismatch"

    # bf16 streams (logits stay f32 via f32 qcat/kcat); loose check
    got16 = ipa_attention_core(q, k, v, qpf, kpf, vpf, mask, z_full, Wb, bb,
                               head_w, c_hidden, inf=1e5,
                               compute_dtype=jnp.bfloat16)
    for g, w in zip(got16, want):
        assert jnp.allclose(g, w, rtol=1e-1, atol=1e-1), "bf16 kernel mismatch"

    print("KERNEL_OK")
</pallas_src>

<mosaic_0001>
module attributes {stable_mosaic.version = 11 : i64} {
  func.func @_ipa_attn_kernel(%arg0: i32, %arg1: i32, %arg2: memref<1x1x16x30xf32, #tpu.memory_space<vmem>>, %arg3: memref<1x1x30x16xf32, #tpu.memory_space<vmem>>, %arg4: memref<1x1x16x40xbf16, #tpu.memory_space<vmem>>, %arg5: memref<1x1x16xf32, #tpu.memory_space<vmem>>, %arg6: memref<1x16x1xf32, #tpu.memory_space<vmem>>, %arg7: memref<1x16x16x16xbf16, #tpu.memory_space<vmem>>, %arg8: memref<4x17xf32, #tpu.memory_space<smem>>, %arg9: memref<1x16x128xf32, #tpu.memory_space<vmem>>) attributes {dimension_semantics = [#tpu.dimension_semantics<parallel>, #tpu.dimension_semantics<arbitrary>], iteration_bounds = array<i64: 2, 4>, scalar_prefetch = 0 : i64, scratch_operands = 0 : i64, tpu.core_type = #tpu.core_type<tc>, window_params = [{transform_indices = @transform_0, window_bounds = array<i64: 1, 1, 16, 30>}, {transform_indices = @transform_1, window_bounds = array<i64: 1, 1, 30, 16>}, {transform_indices = @transform_2, window_bounds = array<i64: 1, 1, 16, 40>}, {transform_indices = @transform_3, window_bounds = array<i64: 1, 1, 16>}, {transform_indices = @transform_4, window_bounds = array<i64: 1, 16, 1>}, {transform_indices = @transform_5, window_bounds = array<i64: 1, 16, 16, 16>}, {transform_indices = @transform_6, window_bounds = array<i64: 4, 17>}, {transform_indices = @transform_7, window_bounds = array<i64: 1, 16, 128>}]} {
    %c0 = arith.constant 0 : index
    %c0_0 = arith.constant 0 : index
    %c0_1 = arith.constant 0 : index
    %c0_2 = arith.constant 0 : index
    %0 = vector.load %arg2[%c0, %c0_0, %c0_1, %c0_2] : memref<1x1x16x30xf32, #tpu.memory_space<vmem>>, vector<1x1x16x30xf32>
    %1 = vector.shape_cast %0 : vector<1x1x16x30xf32> to vector<16x30xf32>
    %c0_3 = arith.constant 0 : index
    %c0_4 = arith.constant 0 : index
    %c0_5 = arith.constant 0 : index
    %c0_6 = arith.constant 0 : index
    %2 = vector.load %arg3[%c0_3, %c0_4, %c0_5, %c0_6] : memref<1x1x30x16xf32, #tpu.memory_space<vmem>>, vector<1x1x30x16xf32>
    %3 = vector.shape_cast %2 : vector<1x1x30x16xf32> to vector<30x16xf32>
    %cst = arith.constant dense<0.000000e+00> : vector<16x16xf32>
    %4 = tpu.matmul %1, %3, %cst {dimension_numbers = #tpu.dot_dimension_numbers<[1], [0], [0], [1], [0, 0, 1, 1], [], []>} : vector<16x30xf32>, vector<30x16xf32>, vector<16x16xf32> -> vector<16x16xf32>
    %5 = arith.index_cast %arg1 : i32 to index
    %c16 = arith.constant 16 : index
    %6 = memref.load %arg8[%5, %c16] : memref<4x17xf32, #tpu.memory_space<smem>>
    %7 = vector.broadcast %6 : f32 to vector<16x16xf32>
    %8 = arith.addf %4, %7 : vector<16x16xf32>
    %9 = arith.index_cast %arg1 : i32 to index
    %c0_7 = arith.constant 0 : index
    %10 = memref.load %arg8[%9, %c0_7] : memref<4x17xf32, #tpu.memory_space<smem>>
    %c0_8 = arith.constant 0 : index
    %c0_9 = arith.constant 0 : index
    %c0_10 = arith.constant 0 : index
    %c0_11 = arith.constant 0 : index
    %11 = vector.load %arg7[%c0_8, %c0_9, %c0_10, %c0_11] : memref<1x16x16x16xbf16, #tpu.memory_space<vmem>>, vector<1x1x16x16xbf16>
    %12 = vector.shape_cast %11 : vector<1x1x16x16xbf16> to vector<16x16xbf16>
    %13 = arith.extf %12 : vector<16x16xbf16> to vector<16x16xf32>
    %14 = vector.broadcast %10 : f32 to vector<16x16xf32>
    %15 = arith.mulf %14, %13 : vector<16x16xf32>
    %16 = arith.addf %8, %15 : vector<16x16xf32>
    %17 = arith.index_cast %arg1 : i32 to index
    %c1 = arith.constant 1 : index
    %18 = memref.load %arg8[%17, %c1] : memref<4x17xf32, #tpu.memory_space<smem>>
    %c0_12 = arith.constant 0 : index
    %c1_13 = arith.constant 1 : index
    %c0_14 = arith.constant 0 : index
    %c0_15 = arith.constant 0 : index
    %19 = vector.load %arg7[%c0_12, %c1_13, %c0_14, %c0_15] : memref<1x16x16x16xbf16, #tpu.memory_space<vmem>>, vector<1x1x16x16xbf16>
    %20 = vector.shape_cast %19 : vector<1x1x16x16xbf16> to vector<16x16xbf16>
    %21 = arith.extf %20 : vector<16x16xbf16> to vector<16x16xf32>
    %22 = vector.broadcast %18 : f32 to vector<16x16xf32>
    %23 = arith.mulf %22, %21 : vector<16x16xf32>
    %24 = arith.addf %16, %23 : vector<16x16xf32>
    %25 = arith.index_cast %arg1 : i32 to index
    %c2 = arith.constant 2 : index
    %26 = memref.load %arg8[%25, %c2] : memref<4x17xf32, #tpu.memory_space<smem>>
    %c0_16 = arith.constant 0 : index
    %c2_17 = arith.constant 2 : index
    %c0_18 = arith.constant 0 : index
    %c0_19 = arith.constant 0 : index
    %27 = vector.load %arg7[%c0_16, %c2_17, %c0_18, %c0_19] : memref<1x16x16x16xbf16, #tpu.memory_space<vmem>>, vector<1x1x16x16xbf16>
    %28 = vector.shape_cast %27 : vector<1x1x16x16xbf16> to vector<16x16xbf16>
    %29 = arith.extf %28 : vector<16x16xbf16> to vector<16x16xf32>
    %30 = vector.broadcast %26 : f32 to vector<16x16xf32>
    %31 = arith.mulf %30, %29 : vector<16x16xf32>
    %32 = arith.addf %24, %31 : vector<16x16xf32>
    %33 = arith.index_cast %arg1 : i32 to index
    %c3 = arith.constant 3 : index
    %34 = memref.load %arg8[%33, %c3] : memref<4x17xf32, #tpu.memory_space<smem>>
    %c0_20 = arith.constant 0 : index
    %c3_21 = arith.constant 3 : index
    %c0_22 = arith.constant 0 : index
    %c0_23 = arith.constant 0 : index
    %35 = vector.load %arg7[%c0_20, %c3_21, %c0_22, %c0_23] : memref<1x16x16x16xbf16, #tpu.memory_space<vmem>>, vector<1x1x16x16xbf16>
    %36 = vector.shape_cast %35 : vector<1x1x16x16xbf16> to vector<16x16xbf16>
    %37 = arith.extf %36 : vector<16x16xbf16> to vector<16x16xf32>
    %38 = vector.broadcast %34 : f32 to vector<16x16xf32>
    %39 = arith.mulf %38, %37 : vector<16x16xf32>
    %40 = arith.addf %32, %39 : vector<16x16xf32>
    %41 = arith.index_cast %arg1 : i32 to index
    %c4 = arith.constant 4 : index
    %42 = memref.load %arg8[%41, %c4] : memref<4x17xf32, #tpu.memory_space<smem>>
    %c0_24 = arith.constant 0 : index
    %c4_25 = arith.constant 4 : index
    %c0_26 = arith.constant 0 : index
    %c0_27 = arith.constant 0 : index
    %43 = vector.load %arg7[%c0_24, %c4_25, %c0_26, %c0_27] : memref<1x16x16x16xbf16, #tpu.memory_space<vmem>>, vector<1x1x16x16xbf16>
    %44 = vector.shape_cast %43 : vector<1x1x16x16xbf16> to vector<16x16xbf16>
    %45 = arith.extf %44 : vector<16x16xbf16> to vector<16x16xf32>
    %46 = vector.broadcast %42 : f32 to vector<16x16xf32>
    %47 = arith.mulf %46, %45 : vector<16x16xf32>
    %48 = arith.addf %40, %47 : vector<16x16xf32>
    %49 = arith.index_cast %arg1 : i32 to index
    %c5 = arith.constant 5 : index
    %50 = memref.load %arg8[%49, %c5] : memref<4x17xf32, #tpu.memory_space<smem>>
    %c0_28 = arith.constant 0 : index
    %c5_29 = arith.constant 5 : index
    %c0_30 = arith.constant 0 : index
    %c0_31 = arith.constant 0 : index
    %51 = vector.load %arg7[%c0_28, %c5_29, %c0_30, %c0_31] : memref<1x16x16x16xbf16, #tpu.memory_space<vmem>>, vector<1x1x16x16xbf16>
    %52 = vector.shape_cast %51 : vector<1x1x16x16xbf16> to vector<16x16xbf16>
    %53 = arith.extf %52 : vector<16x16xbf16> to vector<16x16xf32>
    %54 = vector.broadcast %50 : f32 to vector<16x16xf32>
    %55 = arith.mulf %54, %53 : vector<16x16xf32>
    %56 = arith.addf %48, %55 : vector<16x16xf32>
    %57 = arith.index_cast %arg1 : i32 to index
    %c6 = arith.constant 6 : index
    %58 = memref.load %arg8[%57, %c6] : memref<4x17xf32, #tpu.memory_space<smem>>
    %c0_32 = arith.constant 0 : index
    %c6_33 = arith.constant 6 : index
    %c0_34 = arith.constant 0 : index
    %c0_35 = arith.constant 0 : index
    %59 = vector.load %arg7[%c0_32, %c6_33, %c0_34, %c0_35] : memref<1x16x16x16xbf16, #tpu.memory_space<vmem>>, vector<1x1x16x16xbf16>
    %60 = vector.shape_cast %59 : vector<1x1x16x16xbf16> to vector<16x16xbf16>
    %61 = arith.extf %60 : vector<16x16xbf16> to vector<16x16xf32>
    %62 = vector.broadcast %58 : f32 to vector<16x16xf32>
    %63 = arith.mulf %62, %61 : vector<16x16xf32>
    %64 = arith.addf %56, %63 : vector<16x16xf32>
    %65 = arith.index_cast %arg1 : i32 to index
    %c7 = arith.constant 7 : index
    %66 = memref.load %arg8[%65, %c7] : memref<4x17xf32, #tpu.memory_space<smem>>
    %c0_36 = arith.constant 0 : index
    %c7_37 = arith.constant 7 : index
    %c0_38 = arith.constant 0 : index
    %c0_39 = arith.constant 0 : index
    %67 = vector.load %arg7[%c0_36, %c7_37, %c0_38, %c0_39] : memref<1x16x16x16xbf16, #tpu.memory_space<vmem>>, vector<1x1x16x16xbf16>
    %68 = vector.shape_cast %67 : vector<1x1x16x16xbf16> to vector<16x16xbf16>
    %69 = arith.extf %68 : vector<16x16xbf16> to vector<16x16xf32>
    %70 = vector.broadcast %66 : f32 to vector<16x16xf32>
    %71 = arith.mulf %70, %69 : vector<16x16xf32>
    %72 = arith.addf %64, %71 : vector<16x16xf32>
    %73 = arith.index_cast %arg1 : i32 to index
    %c8 = arith.constant 8 : index
    %74 = memref.load %arg8[%73, %c8] : memref<4x17xf32, #tpu.memory_space<smem>>
    %c0_40 = arith.constant 0 : index
    %c8_41 = arith.constant 8 : index
    %c0_42 = arith.constant 0 : index
    %c0_43 = arith.constant 0 : index
    %75 = vector.load %arg7[%c0_40, %c8_41, %c0_42, %c0_43] : memref<1x16x16x16xbf16, #tpu.memory_space<vmem>>, vector<1x1x16x16xbf16>
    %76 = vector.shape_cast %75 : vector<1x1x16x16xbf16> to vector<16x16xbf16>
    %77 = arith.extf %76 : vector<16x16xbf16> to vector<16x16xf32>
    %78 = vector.broadcast %74 : f32 to vector<16x16xf32>
    %79 = arith.mulf %78, %77 : vector<16x16xf32>
    %80 = arith.addf %72, %79 : vector<16x16xf32>
    %81 = arith.index_cast %arg1 : i32 to index
    %c9 = arith.constant 9 : index
    %82 = memref.load %arg8[%81, %c9] : memref<4x17xf32, #tpu.memory_space<smem>>
    %c0_44 = arith.constant 0 : index
    %c9_45 = arith.constant 9 : index
    %c0_46 = arith.constant 0 : index
    %c0_47 = arith.constant 0 : index
    %83 = vector.load %arg7[%c0_44, %c9_45, %c0_46, %c0_47] : memref<1x16x16x16xbf16, #tpu.memory_space<vmem>>, vector<1x1x16x16xbf16>
    %84 = vector.shape_cast %83 : vector<1x1x16x16xbf16> to vector<16x16xbf16>
    %85 = arith.extf %84 : vector<16x16xbf16> to vector<16x16xf32>
    %86 = vector.broadcast %82 : f32 to vector<16x16xf32>
    %87 = arith.mulf %86, %85 : vector<16x16xf32>
    %88 = arith.addf %80, %87 : vector<16x16xf32>
    %89 = arith.index_cast %arg1 : i32 to index
    %c10 = arith.constant 10 : index
    %90 = memref.load %arg8[%89, %c10] : memref<4x17xf32, #tpu.memory_space<smem>>
    %c0_48 = arith.constant 0 : index
    %c10_49 = arith.constant 10 : index
    %c0_50 = arith.constant 0 : index
    %c0_51 = arith.constant 0 : index
    %91 = vector.load %arg7[%c0_48, %c10_49, %c0_50, %c0_51] : memref<1x16x16x16xbf16, #tpu.memory_space<vmem>>, vector<1x1x16x16xbf16>
    %92 = vector.shape_cast %91 : vector<1x1x16x16xbf16> to vector<16x16xbf16>
    %93 = arith.extf %92 : vector<16x16xbf16> to vector<16x16xf32>
    %94 = vector.broadcast %90 : f32 to vector<16x16xf32>
    %95 = arith.mulf %94, %93 : vector<16x16xf32>
    %96 = arith.addf %88, %95 : vector<16x16xf32>
    %97 = arith.index_cast %arg1 : i32 to index
    %c11 = arith.constant 11 : index
    %98 = memref.load %arg8[%97, %c11] : memref<4x17xf32, #tpu.memory_space<smem>>
    %c0_52 = arith.constant 0 : index
    %c11_53 = arith.constant 11 : index
    %c0_54 = arith.constant 0 : index
    %c0_55 = arith.constant 0 : index
    %99 = vector.load %arg7[%c0_52, %c11_53, %c0_54, %c0_55] : memref<1x16x16x16xbf16, #tpu.memory_space<vmem>>, vector<1x1x16x16xbf16>
    %100 = vector.shape_cast %99 : vector<1x1x16x16xbf16> to vector<16x16xbf16>
    %101 = arith.extf %100 : vector<16x16xbf16> to vector<16x16xf32>
    %102 = vector.broadcast %98 : f32 to vector<16x16xf32>
    %103 = arith.mulf %102, %101 : vector<16x16xf32>
    %104 = arith.addf %96, %103 : vector<16x16xf32>
    %105 = arith.index_cast %arg1 : i32 to index
    %c12 = arith.constant 12 : index
    %106 = memref.load %arg8[%105, %c12] : memref<4x17xf32, #tpu.memory_space<smem>>
    %c0_56 = arith.constant 0 : index
    %c12_57 = arith.constant 12 : index
    %c0_58 = arith.constant 0 : index
    %c0_59 = arith.constant 0 : index
    %107 = vector.load %arg7[%c0_56, %c12_57, %c0_58, %c0_59] : memref<1x16x16x16xbf16, #tpu.memory_space<vmem>>, vector<1x1x16x16xbf16>
    %108 = vector.shape_cast %107 : vector<1x1x16x16xbf16> to vector<16x16xbf16>
    %109 = arith.extf %108 : vector<16x16xbf16> to vector<16x16xf32>
    %110 = vector.broadcast %106 : f32 to vector<16x16xf32>
    %111 = arith.mulf %110, %109 : vector<16x16xf32>
    %112 = arith.addf %104, %111 : vector<16x16xf32>
    %113 = arith.index_cast %arg1 : i32 to index
    %c13 = arith.constant 13 : index
    %114 = memref.load %arg8[%113, %c13] : memref<4x17xf32, #tpu.memory_space<smem>>
    %c0_60 = arith.constant 0 : index
    %c13_61 = arith.constant 13 : index
    %c0_62 = arith.constant 0 : index
    %c0_63 = arith.constant 0 : index
    %115 = vector.load %arg7[%c0_60, %c13_61, %c0_62, %c0_63] : memref<1x16x16x16xbf16, #tpu.memory_space<vmem>>, vector<1x1x16x16xbf16>
    %116 = vector.shape_cast %115 : vector<1x1x16x16xbf16> to vector<16x16xbf16>
    %117 = arith.extf %116 : vector<16x16xbf16> to vector<16x16xf32>
    %118 = vector.broadcast %114 : f32 to vector<16x16xf32>
    %119 = arith.mulf %118, %117 : vector<16x16xf32>
    %120 = arith.addf %112, %119 : vector<16x16xf32>
    %121 = arith.index_cast %arg1 : i32 to index
    %c14 = arith.constant 14 : index
    %122 = memref.load %arg8[%121, %c14] : memref<4x17xf32, #tpu.memory_space<smem>>
    %c0_64 = arith.constant 0 : index
    %c14_65 = arith.constant 14 : index
    %c0_66 = arith.constant 0 : index
    %c0_67 = arith.constant 0 : index
    %123 = vector.load %arg7[%c0_64, %c14_65, %c0_66, %c0_67] : memref<1x16x16x16xbf16, #tpu.memory_space<vmem>>, vector<1x1x16x16xbf16>
    %124 = vector.shape_cast %123 : vector<1x1x16x16xbf16> to vector<16x16xbf16>
    %125 = arith.extf %124 : vector<16x16xbf16> to vector<16x16xf32>
    %126 = vector.broadcast %122 : f32 to vector<16x16xf32>
    %127 = arith.mulf %126, %125 : vector<16x16xf32>
    %128 = arith.addf %120, %127 : vector<16x16xf32>
    %129 = arith.index_cast %arg1 : i32 to index
    %c15 = arith.constant 15 : index
    %130 = memref.load %arg8[%129, %c15] : memref<4x17xf32, #tpu.memory_space<smem>>
    %c0_68 = arith.constant 0 : index
    %c15_69 = arith.constant 15 : index
    %c0_70 = arith.constant 0 : index
    %c0_71 = arith.constant 0 : index
    %131 = vector.load %arg7[%c0_68, %c15_69, %c0_70, %c0_71] : memref<1x16x16x16xbf16, #tpu.memory_space<vmem>>, vector<1x1x16x16xbf16>
    %132 = vector.shape_cast %131 : vector<1x1x16x16xbf16> to vector<16x16xbf16>
    %133 = arith.extf %132 : vector<16x16xbf16> to vector<16x16xf32>
    %134 = vector.broadcast %130 : f32 to vector<16x16xf32>
    %135 = arith.mulf %134, %133 : vector<16x16xf32>
    %136 = arith.addf %128, %135 : vector<16x16xf32>
    %c0_72 = arith.constant 0 : index
    %c0_73 = arith.constant 0 : index
    %c0_74 = arith.constant 0 : index
    %137 = vector.load %arg6[%c0_72, %c0_73, %c0_74] : memref<1x16x1xf32, #tpu.memory_space<vmem>>, vector<1x16x1xf32>
    %138 = vector.shape_cast %137 : vector<1x16x1xf32> to vector<16x1xf32>
    %c0_75 = arith.constant 0 : index
    %c0_76 = arith.constant 0 : index
    %c0_77 = arith.constant 0 : index
    %139 = vector.load %arg5[%c0_75, %c0_76, %c0_77] : memref<1x1x16xf32, #tpu.memory_space<vmem>>, vector<1x1x16xf32>
    %140 = vector.shape_cast %139 : vector<1x1x16xf32> to vector<1x16xf32>
    %141 = vector.broadcast %138 : vector<16x1xf32> to vector<16x16xf32>
    %142 = vector.broadcast %140 : vector<1x16xf32> to vector<16x16xf32>
    %143 = arith.mulf %141, %142 : vector<16x16xf32>
    %cst_78 = arith.constant 1.000000e+00 : f32
    %144 = vector.broadcast %cst_78 : f32 to vector<16x16xf32>
    %145 = arith.subf %143, %144 : vector<16x16xf32>
    %cst_79 = arith.constant 1.000000e+05 : f32
    %146 = vector.broadcast %cst_79 : f32 to vector<16x16xf32>
    %147 = arith.mulf %146, %145 : vector<16x16xf32>
    %148 = arith.addf %136, %147 : vector<16x16xf32>
    %cst_80 = arith.constant dense<0xFF800000> : vector<16xf32>
    %149 = vector.multi_reduction <maximumf>, %148, %cst_80 [1] : vector<16x16xf32> to vector<16xf32>
    %150 = vector.shape_cast %149 : vector<16xf32> to vector<16x1xf32>
    %151 = vector.broadcast %150 : vector<16x1xf32> to vector<16x16xf32>
    %152 = arith.subf %148, %151 : vector<16x16xf32>
    %153 = math.exp %152 : vector<16x16xf32>
    %cst_81 = arith.constant dense<0.000000e+00> : vector<16xf32>
    %154 = vector.multi_reduction <add>, %153, %cst_81 [1] : vector<16x16xf32> to vector<16xf32>
    %155 = vector.shape_cast %154 : vector<16xf32> to vector<16x1xf32>
    %156 = tpu.reciprocal %155 : vector<16x1xf32> -> vector<16x1xf32>
    %157 = vector.broadcast %156 : vector<16x1xf32> to vector<16x16xf32>
    %158 = arith.mulf %153, %157 : vector<16x16xf32>
    %159 = arith.truncf %158 : vector<16x16xf32> to vector<16x16xbf16>
    %c0_82 = arith.constant 0 : index
    %c0_83 = arith.constant 0 : index
    %c0_84 = arith.constant 0 : index
    %c0_85 = arith.constant 0 : index
    %160 = vector.load %arg4[%c0_82, %c0_83, %c0_84, %c0_85] : memref<1x1x16x40xbf16, #tpu.memory_space<vmem>>, vector<1x1x16x40xbf16>
    %161 = vector.shape_cast %160 : vector<1x1x16x40xbf16> to vector<16x40xbf16>
    %cst_86 = arith.constant dense<0.000000e+00> : vector<16x40xf32>
    %162 = tpu.matmul %159, %161, %cst_86 {dimension_numbers = #tpu.dot_dimension_numbers<[1], [0], [0], [1], [0, 0, 1, 1], [], []>} : vector<16x16xbf16>, vector<16x40xbf16>, vector<16x40xf32> -> vector<16x40xf32>
    %c0_87 = arith.constant 0 : index
    %c0_88 = arith.constant 0 : index
    %c0_89 = arith.constant 0 : index
    %c0_90 = arith.constant 0 : index
    %163 = vector.load %arg7[%c0_87, %c0_88, %c0_89, %c0_90] : memref<1x16x16x16xbf16, #tpu.memory_space<vmem>>, vector<1x1x16x16xbf16>
    %164 = vector.shape_cast %163 : vector<1x1x16x16xbf16> to vector<16x16xbf16>
    %165 = arith.extf %164 : vector<16x16xbf16> to vector<16x16xf32>
    %166 = arith.mulf %158, %165 : vector<16x16xf32>
    %cst_91 = arith.constant dense<0.000000e+00> : vector<16xf32>
    %167 = vector.multi_reduction <add>, %166, %cst_91 [1] : vector<16x16xf32> to vector<16xf32>
    %168 = vector.shape_cast %167 : vector<16xf32> to vector<16x1xf32>
    %c0_92 = arith.constant 0 : index
    %c1_93 = arith.constant 1 : index
    %c0_94 = arith.constant 0 : index
    %c0_95 = arith.constant 0 : index
    %169 = vector.load %arg7[%c0_92, %c1_93, %c0_94, %c0_95] : memref<1x16x16x16xbf16, #tpu.memory_space<vmem>>, vector<1x1x16x16xbf16>
    %170 = vector.shape_cast %169 : vector<1x1x16x16xbf16> to vector<16x16xbf16>
    %171 = arith.extf %170 : vector<16x16xbf16> to vector<16x16xf32>
    %172 = arith.mulf %158, %171 : vector<16x16xf32>
    %cst_96 = arith.constant dense<0.000000e+00> : vector<16xf32>
    %173 = vector.multi_reduction <add>, %172, %cst_96 [1] : vector<16x16xf32> to vector<16xf32>
    %174 = vector.shape_cast %173 : vector<16xf32> to vector<16x1xf32>
    %c0_97 = arith.constant 0 : index
    %c2_98 = arith.constant 2 : index
    %c0_99 = arith.constant 0 : index
    %c0_100 = arith.constant 0 : index
    %175 = vector.load %arg7[%c0_97, %c2_98, %c0_99, %c0_100] : memref<1x16x16x16xbf16, #tpu.memory_space<vmem>>, vector<1x1x16x16xbf16>
    %176 = vector.shape_cast %175 : vector<1x1x16x16xbf16> to vector<16x16xbf16>
    %177 = arith.extf %176 : vector<16x16xbf16> to vector<16x16xf32>
    %178 = arith.mulf %158, %177 : vector<16x16xf32>
    %cst_101 = arith.constant dense<0.000000e+00> : vector<16xf32>
    %179 = vector.multi_reduction <add>, %178, %cst_101 [1] : vector<16x16xf32> to vector<16xf32>
    %180 = vector.shape_cast %179 : vector<16xf32> to vector<16x1xf32>
    %c0_102 = arith.constant 0 : index
    %c3_103 = arith.constant 3 : index
    %c0_104 = arith.constant 0 : index
    %c0_105 = arith.constant 0 : index
    %181 = vector.load %arg7[%c0_102, %c3_103, %c0_104, %c0_105] : memref<1x16x16x16xbf16, #tpu.memory_space<vmem>>, vector<1x1x16x16xbf16>
    %182 = vector.shape_cast %181 : vector<1x1x16x16xbf16> to vector<16x16xbf16>
    %183 = arith.extf %182 : vector<16x16xbf16> to vector<16x16xf32>
    %184 = arith.mulf %158, %183 : vector<16x16xf32>
    %cst_106 = arith.constant dense<0.000000e+00> : vector<16xf32>
    %185 = vector.multi_reduction <add>, %184, %cst_106 [1] : vector<16x16xf32> to vector<16xf32>
    %186 = vector.shape_cast %185 : vector<16xf32> to vector<16x1xf32>
    %c0_107 = arith.constant 0 : index
    %c4_108 = arith.constant 4 : index
    %c0_109 = arith.constant 0 : index
    %c0_110 = arith.constant 0 : index
    %187 = vector.load %arg7[%c0_107, %c4_108, %c0_109, %c0_110] : memref<1x16x16x16xbf16, #tpu.memory_space<vmem>>, vector<1x1x16x16xbf16>
    %188 = vector.shape_cast %187 : vector<1x1x16x16xbf16> to vector<16x16xbf16>
    %189 = arith.extf %188 : vector<16x16xbf16> to vector<16x16xf32>
    %190 = arith.mulf %158, %189 : vector<16x16xf32>
    %cst_111 = arith.constant dense<0.000000e+00> : vector<16xf32>
    %191 = vector.multi_reduction <add>, %190, %cst_111 [1] : vector<16x16xf32> to vector<16xf32>
    %192 = vector.shape_cast %191 : vector<16xf32> to vector<16x1xf32>
    %c0_112 = arith.constant 0 : index
    %c5_113 = arith.constant 5 : index
    %c0_114 = arith.constant 0 : index
    %c0_115 = arith.constant 0 : index
    %193 = vector.load %arg7[%c0_112, %c5_113, %c0_114, %c0_115] : memref<1x16x16x16xbf16, #tpu.memory_space<vmem>>, vector<1x1x16x16xbf16>
    %194 = vector.shape_cast %193 : vector<1x1x16x16xbf16> to vector<16x16xbf16>
    %195 = arith.extf %194 : vector<16x16xbf16> to vector<16x16xf32>
    %196 = arith.mulf %158, %195 : vector<16x16xf32>
    %cst_116 = arith.constant dense<0.000000e+00> : vector<16xf32>
    %197 = vector.multi_reduction <add>, %196, %cst_116 [1] : vector<16x16xf32> to vector<16xf32>
    %198 = vector.shape_cast %197 : vector<16xf32> to vector<16x1xf32>
    %c0_117 = arith.constant 0 : index
    %c6_118 = arith.constant 6 : index
    %c0_119 = arith.constant 0 : index
    %c0_120 = arith.constant 0 : index
    %199 = vector.load %arg7[%c0_117, %c6_118, %c0_119, %c0_120] : memref<1x16x16x16xbf16, #tpu.memory_space<vmem>>, vector<1x1x16x16xbf16>
    %200 = vector.shape_cast %199 : vector<1x1x16x16xbf16> to vector<16x16xbf16>
    %201 = arith.extf %200 : vector<16x16xbf16> to vector<16x16xf32>
    %202 = arith.mulf %158, %201 : vector<16x16xf32>
    %cst_121 = arith.constant dense<0.000000e+00> : vector<16xf32>
    %203 = vector.multi_reduction <add>, %202, %cst_121 [1] : vector<16x16xf32> to vector<16xf32>
    %204 = vector.shape_cast %203 : vector<16xf32> to vector<16x1xf32>
    %c0_122 = arith.constant 0 : index
    %c7_123 = arith.constant 7 : index
    %c0_124 = arith.constant 0 : index
    %c0_125 = arith.constant 0 : index
    %205 = vector.load %arg7[%c0_122, %c7_123, %c0_124, %c0_125] : memref<1x16x16x16xbf16, #tpu.memory_space<vmem>>, vector<1x1x16x16xbf16>
    %206 = vector.shape_cast %205 : vector<1x1x16x16xbf16> to vector<16x16xbf16>
    %207 = arith.extf %206 : vector<16x16xbf16> to vector<16x16xf32>
    %208 = arith.mulf %158, %207 : vector<16x16xf32>
    %cst_126 = arith.constant dense<0.000000e+00> : vector<16xf32>
    %209 = vector.multi_reduction <add>, %208, %cst_126 [1] : vector<16x16xf32> to vector<16xf32>
    %210 = vector.shape_cast %209 : vector<16xf32> to vector<16x1xf32>
    %c0_127 = arith.constant 0 : index
    %c8_128 = arith.constant 8 : index
    %c0_129 = arith.constant 0 : index
    %c0_130 = arith.constant 0 : index
    %211 = vector.load %arg7[%c0_127, %c8_128, %c0_129, %c0_130] : memref<1x16x16x16xbf16, #tpu.memory_space<vmem>>, vector<1x1x16x16xbf16>
    %212 = vector.shape_cast %211 : vector<1x1x16x16xbf16> to vector<16x16xbf16>
    %213 = arith.extf %212 : vector<16x16xbf16> to vector<16x16xf32>
    %214 = arith.mulf %158, %213 : vector<16x16xf32>
    %cst_131 = arith.constant dense<0.000000e+00> : vector<16xf32>
    %215 = vector.multi_reduction <add>, %214, %cst_131 [1] : vector<16x16xf32> to vector<16xf32>
    %216 = vector.shape_cast %215 : vector<16xf32> to vector<16x1xf32>
    %c0_132 = arith.constant 0 : index
    %c9_133 = arith.constant 9 : index
    %c0_134 = arith.constant 0 : index
    %c0_135 = arith.constant 0 : index
    %217 = vector.load %arg7[%c0_132, %c9_133, %c0_134, %c0_135] : memref<1x16x16x16xbf16, #tpu.memory_space<vmem>>, vector<1x1x16x16xbf16>
    %218 = vector.shape_cast %217 : vector<1x1x16x16xbf16> to vector<16x16xbf16>
    %219 = arith.extf %218 : vector<16x16xbf16> to vector<16x16xf32>
    %220 = arith.mulf %158, %219 : vector<16x16xf32>
    %cst_136 = arith.constant dense<0.000000e+00> : vector<16xf32>
    %221 = vector.multi_reduction <add>, %220, %cst_136 [1] : vector<16x16xf32> to vector<16xf32>
    %222 = vector.shape_cast %221 : vector<16xf32> to vector<16x1xf32>
    %c0_137 = arith.constant 0 : index
    %c10_138 = arith.constant 10 : index
    %c0_139 = arith.constant 0 : index
    %c0_140 = arith.constant 0 : index
    %223 = vector.load %arg7[%c0_137, %c10_138, %c0_139, %c0_140] : memref<1x16x16x16xbf16, #tpu.memory_space<vmem>>, vector<1x1x16x16xbf16>
    %224 = vector.shape_cast %223 : vector<1x1x16x16xbf16> to vector<16x16xbf16>
    %225 = arith.extf %224 : vector<16x16xbf16> to vector<16x16xf32>
    %226 = arith.mulf %158, %225 : vector<16x16xf32>
    %cst_141 = arith.constant dense<0.000000e+00> : vector<16xf32>
    %227 = vector.multi_reduction <add>, %226, %cst_141 [1] : vector<16x16xf32> to vector<16xf32>
    %228 = vector.shape_cast %227 : vector<16xf32> to vector<16x1xf32>
    %c0_142 = arith.constant 0 : index
    %c11_143 = arith.constant 11 : index
    %c0_144 = arith.constant 0 : index
    %c0_145 = arith.constant 0 : index
    %229 = vector.load %arg7[%c0_142, %c11_143, %c0_144, %c0_145] : memref<1x16x16x16xbf16, #tpu.memory_space<vmem>>, vector<1x1x16x16xbf16>
    %230 = vector.shape_cast %229 : vector<1x1x16x16xbf16> to vector<16x16xbf16>
    %231 = arith.extf %230 : vector<16x16xbf16> to vector<16x16xf32>
    %232 = arith.mulf %158, %231 : vector<16x16xf32>
    %cst_146 = arith.constant dense<0.000000e+00> : vector<16xf32>
    %233 = vector.multi_reduction <add>, %232, %cst_146 [1] : vector<16x16xf32> to vector<16xf32>
    %234 = vector.shape_cast %233 : vector<16xf32> to vector<16x1xf32>
    %c0_147 = arith.constant 0 : index
    %c12_148 = arith.constant 12 : index
    %c0_149 = arith.constant 0 : index
    %c0_150 = arith.constant 0 : index
    %235 = vector.load %arg7[%c0_147, %c12_148, %c0_149, %c0_150] : memref<1x16x16x16xbf16, #tpu.memory_space<vmem>>, vector<1x1x16x16xbf16>
    %236 = vector.shape_cast %235 : vector<1x1x16x16xbf16> to vector<16x16xbf16>
    %237 = arith.extf %236 : vector<16x16xbf16> to vector<16x16xf32>
    %238 = arith.mulf %158, %237 : vector<16x16xf32>
    %cst_151 = arith.constant dense<0.000000e+00> : vector<16xf32>
    %239 = vector.multi_reduction <add>, %238, %cst_151 [1] : vector<16x16xf32> to vector<16xf32>
    %240 = vector.shape_cast %239 : vector<16xf32> to vector<16x1xf32>
    %c0_152 = arith.constant 0 : index
    %c13_153 = arith.constant 13 : index
    %c0_154 = arith.constant 0 : index
    %c0_155 = arith.constant 0 : index
    %241 = vector.load %arg7[%c0_152, %c13_153, %c0_154, %c0_155] : memref<1x16x16x16xbf16, #tpu.memory_space<vmem>>, vector<1x1x16x16xbf16>
    %242 = vector.shape_cast %241 : vector<1x1x16x16xbf16> to vector<16x16xbf16>
    %243 = arith.extf %242 : vector<16x16xbf16> to vector<16x16xf32>
    %244 = arith.mulf %158, %243 : vector<16x16xf32>
    %cst_156 = arith.constant dense<0.000000e+00> : vector<16xf32>
    %245 = vector.multi_reduction <add>, %244, %cst_156 [1] : vector<16x16xf32> to vector<16xf32>
    %246 = vector.shape_cast %245 : vector<16xf32> to vector<16x1xf32>
    %c0_157 = arith.constant 0 : index
    %c14_158 = arith.constant 14 : index
    %c0_159 = arith.constant 0 : index
    %c0_160 = arith.constant 0 : index
    %247 = vector.load %arg7[%c0_157, %c14_158, %c0_159, %c0_160] : memref<1x16x16x16xbf16, #tpu.memory_space<vmem>>, vector<1x1x16x16xbf16>
    %248 = vector.shape_cast %247 : vector<1x1x16x16xbf16> to vector<16x16xbf16>
    %249 = arith.extf %248 : vector<16x16xbf16> to vector<16x16xf32>
    %250 = arith.mulf %158, %249 : vector<16x16xf32>
    %cst_161 = arith.constant dense<0.000000e+00> : vector<16xf32>
    %251 = vector.multi_reduction <add>, %250, %cst_161 [1] : vector<16x16xf32> to vector<16xf32>
    %252 = vector.shape_cast %251 : vector<16xf32> to vector<16x1xf32>
    %c0_162 = arith.constant 0 : index
    %c15_163 = arith.constant 15 : index
    %c0_164 = arith.constant 0 : index
    %c0_165 = arith.constant 0 : index
    %253 = vector.load %arg7[%c0_162, %c15_163, %c0_164, %c0_165] : memref<1x16x16x16xbf16, #tpu.memory_space<vmem>>, vector<1x1x16x16xbf16>
    %254 = vector.shape_cast %253 : vector<1x1x16x16xbf16> to vector<16x16xbf16>
    %255 = arith.extf %254 : vector<16x16xbf16> to vector<16x16xf32>
    %256 = arith.mulf %158, %255 : vector<16x16xf32>
    %cst_166 = arith.constant dense<0.000000e+00> : vector<16xf32>
    %257 = vector.multi_reduction <add>, %256, %cst_166 [1] : vector<16x16xf32> to vector<16xf32>
    %258 = vector.shape_cast %257 : vector<16xf32> to vector<16x1xf32>
    %259 = tpu.concatenate %168, %174, %180, %186, %192, %198, %204, %210, %216, %222, %228, %234, %240, %246, %252, %258 in 1 : vector<16x1xf32>, vector<16x1xf32>, vector<16x1xf32>, vector<16x1xf32>, vector<16x1xf32>, vector<16x1xf32>, vector<16x1xf32>, vector<16x1xf32>, vector<16x1xf32>, vector<16x1xf32>, vector<16x1xf32>, vector<16x1xf32>, vector<16x1xf32>, vector<16x1xf32>, vector<16x1xf32>, vector<16x1xf32> -> vector<16x16xf32>
    %c0_167 = arith.constant 0 : index
    %c0_168 = arith.constant 0 : index
    %c0_169 = arith.constant 0 : index
    %260 = vector.load %arg9[%c0_167, %c0_168, %c0_169] : memref<1x16x128xf32, #tpu.memory_space<vmem>>, vector<1x16x40xf32>
    %261 = vector.shape_cast %260 : vector<1x16x40xf32> to vector<16x40xf32>
    %262 = vector.shape_cast %162 : vector<16x40xf32> to vector<1x16x40xf32>
    tpu.vector_store %arg9[%c0_167, %c0_168, %c0_169], %262 {strides = array<i32>} : memref<1x16x128xf32, #tpu.memory_space<vmem>>, vector<1x16x40xf32>,
    %c0_170 = arith.constant 0 : index
    %c0_171 = arith.constant 0 : index
    %c40 = arith.constant 40 : index
    %263 = vector.load %arg9[%c0_170, %c0_171, %c40] : memref<1x16x128xf32, #tpu.memory_space<vmem>>, vector<1x16x16xf32>
    %264 = vector.shape_cast %263 : vector<1x16x16xf32> to vector<16x16xf32>
    %265 = vector.shape_cast %259 : vector<16x16xf32> to vector<1x16x16xf32>
    tpu.vector_store %arg9[%c0_170, %c0_171, %c40], %265 {strides = array<i32>} : memref<1x16x128xf32, #tpu.memory_space<vmem>>, vector<1x16x16xf32>,
    %cst_172 = arith.constant 0.000000e+00 : f32
    %266 = vector.broadcast %cst_172 : f32 to vector<16x72xf32>
    %c0_173 = arith.constant 0 : index
    %c0_174 = arith.constant 0 : index
    %c56 = arith.constant 56 : index
    %267 = vector.load %arg9[%c0_173, %c0_174, %c56] : memref<1x16x128xf32, #tpu.memory_space<vmem>>, vector<1x16x72xf32>
    %268 = vector.shape_cast %267 : vector<1x16x72xf32> to vector<16x72xf32>
    %269 = vector.shape_cast %266 : vector<16x72xf32> to vector<1x16x72xf32>
    tpu.vector_store %arg9[%c0_173, %c0_174, %c56], %269 {strides = array<i32>} : memref<1x16x128xf32, #tpu.memory_space<vmem>>, vector<1x16x72xf32>,
    return
  }
  func.func @transform_0(%arg0: i32, %arg1: i32) -> (i32, i32, i32, i32) {
    %c0_i32 = arith.constant 0 : i32
    %c0_i32_0 = arith.constant 0 : i32
    %c0_i32_1 = arith.constant 0 : i32
    return %arg0, %arg1, %c0_i32, %c0_i32_0 : i32, i32, i32, i32
  }
  func.func @transform_1(%arg0: i32, %arg1: i32) -> (i32, i32, i32, i32) {
    %c0_i32 = arith.constant 0 : i32
    %c0_i32_0 = arith.constant 0 : i32
    %c0_i32_1 = arith.constant 0 : i32
    return %arg0, %arg1, %c0_i32, %c0_i32_0 : i32, i32, i32, i32
  }
  func.func @transform_2(%arg0: i32, %arg1: i32) -> (i32, i32, i32, i32) {
    %c0_i32 = arith.constant 0 : i32
    %c0_i32_0 = arith.constant 0 : i32
    %c0_i32_1 = arith.constant 0 : i32
    return %arg0, %arg1, %c0_i32, %c0_i32_0 : i32, i32, i32, i32
  }
  func.func @transform_3(%arg0: i32, %arg1: i32) -> (i32, i32, i32) {
    %c0_i32 = arith.constant 0 : i32
    %c0_i32_0 = arith.constant 0 : i32
    %c0_i32_1 = arith.constant 0 : i32
    return %arg0, %c0_i32, %c0_i32_0 : i32, i32, i32
  }
  func.func @transform_4(%arg0: i32, %arg1: i32) -> (i32, i32, i32) {
    %c0_i32 = arith.constant 0 : i32
    %c0_i32_0 = arith.constant 0 : i32
    %c0_i32_1 = arith.constant 0 : i32
    return %arg0, %c0_i32, %c0_i32_0 : i32, i32, i32
  }
  func.func @transform_5(%arg0: i32, %arg1: i32) -> (i32, i32, i32, i32) {
    %c0_i32 = arith.constant 0 : i32
    %c0_i32_0 = arith.constant 0 : i32
    %c0_i32_1 = arith.constant 0 : i32
    %c0_i32_2 = arith.constant 0 : i32
    return %arg0, %c0_i32, %c0_i32_0, %c0_i32_1 : i32, i32, i32, i32
  }
  func.func @transform_6(%arg0: i32, %arg1: i32) -> (i32, i32) {
    %c0_i32 = arith.constant 0 : i32
    %c0_i32_0 = arith.constant 0 : i32
    %c0_i32_1 = arith.constant 0 : i32
    return %c0_i32, %c0_i32_0 : i32, i32
  }
  func.func @transform_7(%arg0: i32, %arg1: i32) -> (i32, i32, i32) {
    %c0_i32 = arith.constant 0 : i32
    %c0_i32_0 = arith.constant 0 : i32
    return %arg0, %c0_i32, %arg1 : i32, i32, i32
  }
}

</mosaic_0001>

<llo_original>
// kernel: tpu_custom_call.1
$region0: #{tpu_custom_call.1}
  #allocation0 [shape = 'u32[]', space=smem, size = 0x4, offset = 0x4, fixed_abs, tag = 'smem constant byte address 0x4 - core index']
  #allocation1 [shape = 'u32[144,128]{1,0:T(1,128)}', space=vmem, size = 0x12000, scoped, tag = 'internal scratch']
  %s0 = inlined_call_operand.vmem [shape: f32[2,4,16,30], index: 0, kind: input, shape index: {}]
  %s1 = inlined_call_operand.vmem [shape: f32[2,4,30,16], index: 1, kind: input, shape index: {}]
  %s2 = inlined_call_operand.hbm [shape: bf16[2,4,16,40], index: 2, kind: input, shape index: {}]
  %s3 = inlined_call_operand.vmem [shape: f32[2,1,16], index: 3, kind: input, shape index: {}]
  %s4 = inlined_call_operand.vmem [shape: f32[2,16,1], index: 4, kind: input, shape index: {}]
  %s5 = inlined_call_operand.vmem [shape: bf16[2,16,16,16], index: 5, kind: input, shape index: {}]
  %s6 = inlined_call_operand.vmem [shape: f32[4,17], index: 6, kind: input, shape index: {}]
  %s7 = inlined_call_operand.hbm [shape: f32[2,16,512], index: 7, kind: output, shape index: {}]
  %s8 = sld [smem:[#allocation0]]
  $region69: #{tpu_custom_call.1} parent=0
    _
  %s10 = ssub.s32 1, %s8
  %s11 = scalar_select 0, %s10, %s8
  $region1: #{tpu_custom_call.1} parent=0
    #allocation2 [shape = 'u8[8192]{0}', space=vmem, size = 0x2000, scoped, tag = 'input window, operand 2']
    #allocation3 [shape = 's32[2]{0}', space=sflag, size = 0x8, scoped, tag = 'scoped memory for tpu_custom_call.1']
    #allocation4 [shape = 's32[2]{0}', space=sflag, size = 0x8, scoped, tag = 'scoped memory for tpu_custom_call.1']
    #allocation5 [shape = 's32[2]{0}', space=sflag, size = 0x8, scoped, tag = 'scoped memory for tpu_custom_call.1']
    #allocation6 [shape = 'u8[2048]{0}', space=smem, size = 0x800, scoped, tag = 'input window, operand 6, single buffered']
    #allocation7 [shape = 'u8[16384]{0}', space=vmem, size = 0x4000, scoped, tag = 'output window, operand 0']
    %12 = vsyncpa [#allocation3], 0
    %s13 = scalar_lea.sflag [#allocation3], 1
    %14 = vsyncpa %s13, 0
    %15 = vsyncpa [#allocation5], 0
    %16 = vsyncpa [#allocation4], 0
    %s17 = scalar_lea.sflag [#allocation4], 1
    %18 = vsyncpa %s17, 0
    loop: start=0, step=1, limit=10
    $region2: #{tpu_custom_call.1} parent=1 // loop_pre_header
      _
    $region3: #{tpu_custom_call.1} parent=1 // loop_header
      %s20 = sphi 0, %s24
      %p21 = scmp.ge.s32.totalorder %s20, 10
      %s27 = sphi 0, %s39
      %s28 = sphi 0, %s35
      %s29 = sphi 0, %s27
      %s30 = sphi 0, %s28
      %s31 = sphi 0, %s29
      %s32 = sphi 0, %s30
      %s44 = sphi 0, %s46
      %s47 = sphi 0, %s44
      %s48 = sphi 0, %s47
      %s64 = sphi 0, %s48
      %s72 = sphi 0, %s74
      %s75 = sphi 0, %s72
      %s76 = sphi 0, %s75
      %s92 = sphi 0, %s76
      %s100 = sphi 0, %s102
      %s103 = sphi 0, %s100
      %s104 = sphi 0, %s103
      %s120 = sphi 0, %s104
      %s126 = sphi 0, %s128
      %s129 = sphi 0, %s126
      %s130 = sphi 0, %s129
      %s146 = sphi 0, %s130
      %s152 = sphi 0, %s154
      %s155 = sphi 0, %s152
      %s156 = sphi 0, %s155
      %s172 = sphi 0, %s156
      %s178 = sphi 0, %s180
      %s181 = sphi 0, %s178
      %s182 = sphi 0, %s181
      %s198 = sphi 0, %s182
      %s202 = sphi 0, %s202
      %s204 = sphi 0, %s202
      %s205 = sphi 0, %s204
      %s219 = sphi 0, %s205
      %s227 = sphi 0, %s229
      %s230 = sphi 0, %s227
      %s231 = sphi 0, %s230
      %s247 = sphi 0, %s231
    $region4: #{tpu_custom_call.1} parent=1 // loop_header_branch
      %23 = sbr.rel (%p21) target = $region8
    $region5: #{tpu_custom_call.1} parent=1 // loop_body
      %s25 = ssub.s32 %s20, 1
      %s26 = ssub.s32 %s20, 2
      %s33 = sadd.s32 1, %s28
      %p34 = scmp.ge.s32.totalorder %s33, 4
      %s35 = scalar_select %p34, 0, %s33
      %s36 = sadd.s32 1, %s27
      %s37 = scalar_select %p34, %s36, %s27
      %p38 = scmp.ge.s32.totalorder %s37, 2
      %s39 = scalar_select %p38, 0, %s37
      %s40 = ssub.s32 %s27, %s39
      %s41 = ssub.s32 %s28, %s35
      %s42 = sor.u32 %s40, %s41
      %p43 = scmp.eq.s32.totalorder %s42, 0
      %s45 = sadd.s32 %s44, 1
      %s46 = scalar_select %p43, %s44, %s45
      %p49 = pneg %p43
      %p50 = scmp.eq.s32.totalorder %s20, 7
      %p51 = por %p49, %p50
      %p52 = scmp.ne.s32.totalorder %s44, %s47
      %p53 = scmp.eq.s32.totalorder %s20, 0
      %p54 = por %p52, %p53
      %p55 = scmp.ne.s32.totalorder %s44, %s47
      %p56 = scmp.eq.s32.totalorder %s25, 7
      %p57 = por %p55, %p56
      %p58 = scmp.ne.s32.totalorder %s47, %s48
      %p59 = scmp.eq.s32.totalorder %s25, 0
      %p60 = por %p58, %p59
      %p61 = scmp.ne.s32.totalorder %s47, %s48
      %p62 = scmp.eq.s32.totalorder %s26, 7
      %p63 = por %p61, %p62
      %p65 = scmp.ne.s32.totalorder %s48, %s64
      %p66 = scmp.eq.s32.totalorder %s26, 0
      %p67 = por %p65, %p66
      %s68 = ssub.s32 %s27, %s39
      %s69 = ssub.s32 %s28, %s35
      %s70 = sor.u32 %s68, %s69
      %p71 = scmp.eq.s32.totalorder %s70, 0
      %s73 = sadd.s32 %s72, 1
      %s74 = scalar_select %p71, %s72, %s73
      %p77 = pneg %p71
      %p78 = scmp.eq.s32.totalorder %s20, 7
      %p79 = por %p77, %p78
      %p80 = scmp.ne.s32.totalorder %s72, %s75
      %p81 = scmp.eq.s32.totalorder %s20, 0
      %p82 = por %p80, %p81
      %p83 = scmp.ne.s32.totalorder %s72, %s75
      %p84 = scmp.eq.s32.totalorder %s25, 7
      %p85 = por %p83, %p84
      %p86 = scmp.ne.s32.totalorder %s75, %s76
      %p87 = scmp.eq.s32.totalorder %s25, 0
      %p88 = por %p86, %p87
      %p89 = scmp.ne.s32.totalorder %s75, %s76
      %p90 = scmp.eq.s32.totalorder %s26, 7
      %p91 = por %p89, %p90
      %p93 = scmp.ne.s32.totalorder %s76, %s92
      %p94 = scmp.eq.s32.totalorder %s26, 0
      %p95 = por %p93, %p94
      %s96 = ssub.s32 %s27, %s39
      %s97 = ssub.s32 %s28, %s35
      %s98 = sor.u32 %s96, %s97
      %p99 = scmp.eq.s32.totalorder %s98, 0
      %s101 = sadd.s32 %s100, 1
      %s102 = scalar_select %p99, %s100, %s101
      %p105 = pneg %p99
      %p106 = scmp.eq.s32.totalorder %s20, 7
      %p107 = por %p105, %p106
      %p108 = scmp.ne.s32.totalorder %s100, %s103
      %p109 = scmp.eq.s32.totalorder %s20, 0
      %p110 = por %p108, %p109
      %p111 = scmp.ne.s32.totalorder %s100, %s103
      %p112 = scmp.eq.s32.totalorder %s25, 7
      %p113 = por %p111, %p112
      %p114 = scmp.ne.s32.totalorder %s103, %s104
      %p115 = scmp.eq.s32.totalorder %s25, 0
      %p116 = por %p114, %p115
      %p117 = scmp.ne.s32.totalorder %s103, %s104
      %p118 = scmp.eq.s32.totalorder %s26, 7
      %p119 = por %p117, %p118
      %p121 = scmp.ne.s32.totalorder %s104, %s120
      %p122 = scmp.eq.s32.totalorder %s26, 0
      %p123 = por %p121, %p122
      %s124 = ssub.s32 %s27, %s39
      %p125 = scmp.eq.s32.totalorder %s124, 0
      %s127 = sadd.s32 %s126, 1
      %s128 = scalar_select %p125, %s126, %s127
      %p131 = pneg %p125
      %p132 = scmp.eq.s32.totalorder %s20, 7
      %p133 = por %p131, %p132
      %p134 = scmp.ne.s32.totalorder %s126, %s129
      %p135 = scmp.eq.s32.totalorder %s20, 0
      %p136 = por %p134, %p135
      %p137 = scmp.ne.s32.totalorder %s126, %s129
      %p138 = scmp.eq.s32.totalorder %s25, 7
      %p139 = por %p137, %p138
      %p140 = scmp.ne.s32.totalorder %s129, %s130
      %p141 = scmp.eq.s32.totalorder %s25, 0
      %p142 = por %p140, %p141
      %p143 = scmp.ne.s32.totalorder %s129, %s130
      %p144 = scmp.eq.s32.totalorder %s26, 7
      %p145 = por %p143, %p144
      %p147 = scmp.ne.s32.totalorder %s130, %s146
      %p148 = scmp.eq.s32.totalorder %s26, 0
      %p149 = por %p147, %p148
      %s150 = ssub.s32 %s27, %s39
      %p151 = scmp.eq.s32.totalorder %s150, 0
      %s153 = sadd.s32 %s152, 1
      %s154 = scalar_select %p151, %s152, %s153
      %p157 = pneg %p151
      %p158 = scmp.eq.s32.totalorder %s20, 7
      %p159 = por %p157, %p158
      %p160 = scmp.ne.s32.totalorder %s152, %s155
      %p161 = scmp.eq.s32.totalorder %s20, 0
      %p162 = por %p160, %p161
      %p163 = scmp.ne.s32.totalorder %s152, %s155
      %p164 = scmp.eq.s32.totalorder %s25, 7
      %p165 = por %p163, %p164
      %p166 = scmp.ne.s32.totalorder %s155, %s156
      %p167 = scmp.eq.s32.totalorder %s25, 0
      %p168 = por %p166, %p167
      %p169 = scmp.ne.s32.totalorder %s155, %s156
      %p170 = scmp.eq.s32.totalorder %s26, 7
      %p171 = por %p169, %p170
      %p173 = scmp.ne.s32.totalorder %s156, %s172
      %p174 = scmp.eq.s32.totalorder %s26, 0
      %p175 = por %p173, %p174
      %s176 = ssub.s32 %s27, %s39
      %p177 = scmp.eq.s32.totalorder %s176, 0
      %s179 = sadd.s32 %s178, 1
      %s180 = scalar_select %p177, %s178, %s179
      %p183 = pneg %p177
      %p184 = scmp.eq.s32.totalorder %s20, 7
      %p185 = por %p183, %p184
      %p186 = scmp.ne.s32.totalorder %s178, %s181
      %p187 = scmp.eq.s32.totalorder %s20, 0
      %p188 = por %p186, %p187
      %p189 = scmp.ne.s32.totalorder %s178, %s181
      %p190 = scmp.eq.s32.totalorder %s25, 7
      %p191 = por %p189, %p190
      %p192 = scmp.ne.s32.totalorder %s181, %s182
      %p193 = scmp.eq.s32.totalorder %s25, 0
      %p194 = por %p192, %p193
      %p195 = scmp.ne.s32.totalorder %s181, %s182
      %p196 = scmp.eq.s32.totalorder %s26, 7
      %p197 = por %p195, %p196
      %p199 = scmp.ne.s32.totalorder %s182, %s198
      %p200 = scmp.eq.s32.totalorder %s26, 0
      %p201 = por %p199, %p200
      %s203 = sadd.s32 %s202, 1
      %p206 = scmp.eq.s32.totalorder %s20, 7
      %p207 = scmp.ne.s32.totalorder %s202, %s204
      %p208 = scmp.eq.s32.totalorder %s20, 0
      %p209 = por %p207, %p208
      %p210 = scmp.ne.s32.totalorder %s202, %s204
      %p211 = scmp.eq.s32.totalorder %s25, 7
      %p212 = por %p210, %p211
      %p213 = scmp.ne.s32.totalorder %s204, %s205
      %p214 = scmp.eq.s32.totalorder %s25, 0
      %p215 = por %p213, %p214
      %p216 = scmp.ne.s32.totalorder %s204, %s205
      %p217 = scmp.eq.s32.totalorder %s26, 7
      %p218 = por %p216, %p217
      %p220 = scmp.ne.s32.totalorder %s205, %s219
      %p221 = scmp.eq.s32.totalorder %s26, 0
      %p222 = por %p220, %p221
      %s223 = ssub.s32 %s27, %s39
      %s224 = ssub.s32 %s28, %s35
      %s225 = sor.u32 %s223, %s224
      %p226 = scmp.eq.s32.totalorder %s225, 0
      %s228 = sadd.s32 %s227, 1
      %s229 = scalar_select %p226, %s227, %s228
      %p232 = pneg %p226
      %p233 = scmp.eq.s32.totalorder %s20, 7
      %p234 = por %p232, %p233
      %p235 = scmp.ne.s32.totalorder %s227, %s230
      %p236 = scmp.eq.s32.totalorder %s20, 0
      %p237 = por %p235, %p236
      %p238 = scmp.ne.s32.totalorder %s227, %s230
      %p239 = scmp.eq.s32.totalorder %s25, 7
      %p240 = por %p238, %p239
      %p241 = scmp.ne.s32.totalorder %s230, %s231
      %p242 = scmp.eq.s32.totalorder %s25, 0
      %p243 = por %p241, %p242
      %p244 = scmp.ne.s32.totalorder %s230, %s231
      %p245 = scmp.eq.s32.totalorder %s26, 7
      %p246 = por %p244, %p245
      %p248 = scmp.ne.s32.totalorder %s231, %s247
      %p249 = scmp.eq.s32.totalorder %s26, 0
      %p250 = por %p248, %p249
      %p251 = scmp.le.s32.totalorder 1, %s20
      %p252 = scmp.lt.s32.totalorder %s20, 9
      %p253 = pnand %p251, %p252
      %p254 = pneg %p253
      // Predicated region
      $region9: #{tpu_custom_call.1} parent=5 // pred_check
        _
      $region10: #{tpu_custom_call.1} parent=5 // pred_check_branch
        %256 = sbr.rel (%p253) target = $region12
      $region11: #{tpu_custom_call.1} parent=5 // pred_region
        %s257 = ssub.s32 %s20, 1
        // Predicated region
        $region13: #{tpu_custom_call.1} parent=11 // pred_check
          %p258 = pneg %p215
        $region14: #{tpu_custom_call.1} parent=11 // pred_check_branch
          %260 = sbr.rel (%p258) target = $region16
        $region15: #{tpu_custom_call.1} parent=11 // pred_region
          %s262 = ssub.s32 64, 64
          %263 = vsyncadd [#allocation5], %s262
          %s265 = sshll.u32 %s6, 4
          %s266 = int_to_ptr.vmem [resolvable:$true] %s265
          %268 = dma.vmem_to_smem %s266, 64, [#allocation6], [#allocation5]
        $region16: #{tpu_custom_call.1} parent=11 // pred_fallthru
          _
      $region12: #{tpu_custom_call.1} parent=5 // pred_fallthru
        _
      %p269 = scmp.lt.s32.totalorder %s20, 8
      // Predicated region
      $region17: #{tpu_custom_call.1} parent=5 // pred_check
        %p270 = pneg %p269
      $region18: #{tpu_custom_call.1} parent=5 // pred_check_branch
        %272 = sbr.rel (%p270) target = $region20
      $region19: #{tpu_custom_call.1} parent=5 // pred_region
        // Predicated region
        $region21: #{tpu_custom_call.1} parent=19 // pred_check
          %p273 = pneg %p54
        $region22: #{tpu_custom_call.1} parent=19 // pred_check_branch
          %275 = sbr.rel (%p273) target = $region24
        $region23: #{tpu_custom_call.1} parent=19 // pred_region
          %p276 = scmp.lt.s32.totalorder %s27, 1
          %s277 = scalar_select %p276, %s27, 1
          %p278 = scmp.lt.s32.totalorder %s28, 3
          %s279 = scalar_select %p278, %s28, 3
          %s280 = smul.addr %s279, 2
          %s281 = smul.addr %s277, 8
          %s282 = sadd.s32 %s280, %s281
          %s283 = smul.addr %s282, 8
          %s284 = scalar_lea.vmem %s0, %s283
        $region24: #{tpu_custom_call.1} parent=19 // pred_fallthru
          _
        // Predicated region
        $region25: #{tpu_custom_call.1} parent=19 // pred_check
          %p285 = pneg %p82
        $region26: #{tpu_custom_call.1} parent=19 // pred_check_branch
          %287 = sbr.rel (%p285) target = $region28
        $region27: #{tpu_custom_call.1} parent=19 // pred_region
          %p288 = scmp.lt.s32.totalorder %s27, 1
          %s289 = scalar_select %p288, %s27, 1
          %p290 = scmp.lt.s32.totalorder %s28, 3
          %s291 = scalar_select %p290, %s28, 3
          %s292 = smul.addr %s291, 4
          %s293 = smul.addr %s289, 16
          %s294 = sadd.s32 %s292, %s293
          %s295 = smul.addr %s294, 8
          %s296 = scalar_lea.vmem %s1, %s295
        $region28: #{tpu_custom_call.1} parent=19 // pred_fallthru
          _
        // Predicated region
        $region29: #{tpu_custom_call.1} parent=19 // pred_check
          %p297 = pneg %p110
        $region30: #{tpu_custom_call.1} parent=19 // pred_check_branch
          %299 = sbr.rel (%p297) target = $region32
        $region31: #{tpu_custom_call.1} parent=19 // pred_region
          %s300 = sand.u32 %s100, 1
          %s301 = scalar_lea.sflag [#allocation3], %s300
          %s302 = sand.u32 %s100, 1
          %s303 = smul.addr %s302, 8
          %s304 = scalar_lea.vmem [#allocation2], %s303
          %s306 = ssub.s32 128, 128
          %307 = vsyncadd %s301, %s306
          %s308 = smul.addr %s28, 2
          %s309 = smul.addr %s27, 8
          %s310 = sadd.s32 %s308, %s309
          %s311 = smul.addr %s310, 64
          %s312 = scalar_lea.hbm %s2, %s311
          %s313 = sshll.u32 %s304, 4
          %s314 = int_to_ptr.vmem [resolvable:$true] %s313
          %319 = dma.hbm_to_vmem [thread:$0]  %s312, 128, %s314, %s301, 64, 64, 4
        $region32: #{tpu_custom_call.1} parent=19 // pred_fallthru
          _
        // Predicated region
        $region33: #{tpu_custom_call.1} parent=19 // pred_check
          %p320 = pneg %p136
        $region34: #{tpu_custom_call.1} parent=19 // pred_check_branch
          %322 = sbr.rel (%p320) target = $region36
        $region35: #{tpu_custom_call.1} parent=19 // pred_region
          %p323 = scmp.lt.s32.totalorder %s27, 1
          %s324 = scalar_select %p323, %s27, 1
          %s325 = scalar_lea.vmem %s3, %s324
        $region36: #{tpu_custom_call.1} parent=19 // pred_fallthru
          _
        // Predicated region
        $region37: #{tpu_custom_call.1} parent=19 // pred_check
          %p326 = pneg %p162
        $region38: #{tpu_custom_call.1} parent=19 // pred_check_branch
          %328 = sbr.rel (%p326) target = $region40
        $region39: #{tpu_custom_call.1} parent=19 // pred_region
          %p329 = scmp.lt.s32.totalorder %s27, 1
          %s330 = scalar_select %p329, %s27, 1
          %s331 = smul.addr %s330, 2
          %s332 = smul.addr %s331, 8
          %s333 = scalar_lea.vmem %s4, %s332
        $region40: #{tpu_custom_call.1} parent=19 // pred_fallthru
          _
        // Predicated region
        $region41: #{tpu_custom_call.1} parent=19 // pred_check
          %p334 = pneg %p188
        $region42: #{tpu_custom_call.1} parent=19 // pred_check_branch
          %336 = sbr.rel (%p334) target = $region44
        $region43: #{tpu_custom_call.1} parent=19 // pred_region
          %p337 = scmp.lt.s32.totalorder %s27, 1
          %s338 = scalar_select %p337, %s27, 1
          %s339 = smul.addr %s338, 32
          %s340 = smul.addr %s339, 4
          %s341 = scalar_lea.vmem %s5, %s340
        $region44: #{tpu_custom_call.1} parent=19 // pred_fallthru
          _
      $region20: #{tpu_custom_call.1} parent=5 // pred_fallthru
        _
      %p342 = scmp.le.s32.totalorder 1, %s20
      %p343 = scmp.lt.s32.totalorder %s20, 9
      %p344 = pnand %p342, %p343
      %p345 = pneg %p344
      // Predicated region
      $region45: #{tpu_custom_call.1} parent=5 // pred_check
        _
      $region46: #{tpu_custom_call.1} parent=5 // pred_check_branch
        %347 = sbr.rel (%p344) target = $region48
      $region47: #{tpu_custom_call.1} parent=5 // pred_region
        %s348 = ssub.s32 %s20, 1
        %s349 = sand.u32 %s103, 1
        %s350 = scalar_lea.sflag [#allocation3], %s349
        %s351 = sand.u32 %s103, 1
        %s352 = smul.addr %s351, 8
        %s353 = scalar_lea.vmem [#allocation2], %s352
        // Predicated region
        $region49: #{tpu_custom_call.1} parent=47 // pred_check
          %p354 = pneg %p116
        $region50: #{tpu_custom_call.1} parent=47 // pred_check_branch
          %356 = sbr.rel (%p354) target = $region52
        $region51: #{tpu_custom_call.1} parent=47 // pred_region
          %357 = dma.done %s350, 128
        $region52: #{tpu_custom_call.1} parent=47 // pred_fallthru
          _
        // Predicated region
        $region53: #{tpu_custom_call.1} parent=47 // pred_check
          %p358 = pneg %p215
        $region54: #{tpu_custom_call.1} parent=47 // pred_check_branch
          %360 = sbr.rel (%p358) target = $region56
        $region55: #{tpu_custom_call.1} parent=47 // pred_region
          %361 = dma.done [#allocation5], 64
        $region56: #{tpu_custom_call.1} parent=47 // pred_fallthru
          _
        %362 = sfence
        %p363 = scmp.lt.s32.totalorder %s29, 1
        %s364 = scalar_select %p363, %s29, 1
        %p365 = scmp.lt.s32.totalorder %s30, 3
        %s366 = scalar_select %p365, %s30, 3
        %s367 = smul.addr %s366, 2
        %s368 = smul.addr %s364, 8
        %s369 = sadd.s32 %s367, %s368
        %s370 = smul.addr %s369, 8
        %s371 = scalar_lea.vmem %s0, %s370
        %p372 = pneg %p60
        %p373 = pneg %p57
        %p374 = scmp.lt.s32.totalorder %s29, 1
        %s375 = scalar_select %p374, %s29, 1
        %p376 = scmp.lt.s32.totalorder %s30, 3
        %s377 = scalar_select %p376, %s30, 3
        %s378 = smul.addr %s377, 4
        %s379 = smul.addr %s375, 16
        %s380 = sadd.s32 %s378, %s379
        %s381 = smul.addr %s380, 8
        %s382 = scalar_lea.vmem %s1, %s381
        %p383 = pneg %p88
        %p384 = pneg %p85
        %s385 = sand.u32 %s103, 1
        %s386 = scalar_lea.sflag [#allocation3], %s385
        %s387 = sand.u32 %s103, 1
        %s388 = smul.addr %s387, 8
        %s389 = scalar_lea.vmem [#allocation2], %s388
        %p390 = pneg %p116
        %p391 = pneg %p113
        %p392 = scmp.lt.s32.totalorder %s29, 1
        %s393 = scalar_select %p392, %s29, 1
        %s394 = scalar_lea.vmem %s3, %s393
        %p395 = pneg %p142
        %p396 = pneg %p139
        %p397 = scmp.lt.s32.totalorder %s29, 1
        %s398 = scalar_select %p397, %s29, 1
        %s399 = smul.addr %s398, 2
        %s400 = smul.addr %s399, 8
        %s401 = scalar_lea.vmem %s4, %s400
        %p402 = pneg %p168
        %p403 = pneg %p165
        %p404 = scmp.lt.s32.totalorder %s29, 1
        %s405 = scalar_select %p404, %s29, 1
        %s406 = smul.addr %s405, 32
        %s407 = smul.addr %s406, 4
        %s408 = scalar_lea.vmem %s5, %s407
        %p409 = pneg %p194
        %p410 = pneg %p191
        %p411 = pneg %p215
        %p412 = pneg %p212
        %p413 = pneg %p243
        %p414 = pneg %p240
        %s415 = sand.u32 %s230, 1
        %s416 = scalar_lea.sflag [#allocation4], %s415
        %s417 = sand.u32 %s230, 1
        %s418 = smul.addr %s417, 16
        %s419 = scalar_lea.vmem [#allocation7], %s418
        %p420 = scmp.lt.s32.totalorder %s29, 1
        %s421 = scalar_select %p420, %s29, 1
        %p422 = scmp.lt.s32.totalorder %s30, 3
        %s423 = scalar_select %p422, %s30, 3
        %s424 = smul.addr %s423, 2
        %s425 = smul.addr %s421, 8
        %s426 = sadd.s32 %s424, %s425
        %s427 = smul.addr %s426, 8
        %s428 = scalar_lea.vmem %s0, %s427
        %p429 = scmp.lt.s32.totalorder %s29, 1
        %s430 = scalar_select %p429, %s29, 1
        %p431 = scmp.lt.s32.totalorder %s30, 3
        %s432 = scalar_select %p431, %s30, 3
        %s433 = smul.addr %s432, 4
        %s434 = smul.addr %s430, 16
        %s435 = sadd.s32 %s433, %s434
        %s436 = smul.addr %s435, 8
        %s437 = scalar_lea.vmem %s1, %s436
        %p438 = scmp.lt.s32.totalorder %s29, 1
        %s439 = scalar_select %p438, %s29, 1
        %s440 = scalar_lea.vmem %s3, %s439
        %p441 = scmp.lt.s32.totalorder %s29, 1
        %s442 = scalar_select %p441, %s29, 1
        %s443 = smul.addr %s442, 2
        %s444 = smul.addr %s443, 8
        %s445 = scalar_lea.vmem %s4, %s444
        %p446 = scmp.lt.s32.totalorder %s29, 1
        %s447 = scalar_select %p446, %s29, 1
        %s448 = smul.addr %s447, 32
        %s449 = smul.addr %s448, 4
        %s450 = scalar_lea.vmem %s5, %s449
        %v452 = vld [vmem:[%s428] sm:$0xff]
        %v453 = vld [vmem:[%s428 + $0x8] sm:$0xff]
        %v454 = vld [vmem:[%s437] sm:$0xff]
        %v455 = vld [vmem:[%s437 + $0x8] sm:$0xff]
        %v456 = vld [vmem:[%s437 + $0x10] sm:$0xff]
        %v457 = vld [vmem:[%s437 + $0x18] sm:$0x3f]
        %s458 = smul.u32 %s30, 128
        %s459 = sadd.s32 %s458, 16
        %s460 = sld [smem:[#allocation6 + %s459]]
        %v461 = vstv %s460
        %vm462 = vcmask 244736
        %v464 = vsel %vm462, %v452, 0
        %v467 = vsel %vm462, %v453, 0
        %vm469 = vcmask 1045504
        %v471 = vsel %vm469, %v457, 0
        %473 = vmatprep.subr.mxu0 0.0
        %474 = vmatpush1.msra.mxu0 %v454
        %475 = vmatprep.subr.mxu0 0.0
        %476 = vmatpush1.msra.mxu0 %v455
        %477 = vmatprep.subr.mxu0 0.0
        %478 = vmatpush1.msra.mxu0 %v456
        %479 = vmatprep.subr.mxu0 0.0
        %480 = vmatpush1.msra.mxu0 %v471
        %481 = vmatprep.subr.mxu0 0.0
        %482 = vmatpush1.msra.mxu0 0.0
        %483 = vmatprep.subr.mxu0 0.0
        %484 = vmatpush1.msra.mxu0 0.0
        %485 = vmatprep.subr.mxu0 0.0
        %486 = vmatpush1.msra.mxu0 0.0
        %487 = vmatprep.subr.mxu0 0.0
        %488 = vmatpush1.msra.mxu0 0.0
        %489 = vmatprep.subr.mxu0 0.0
        %490 = vmatpush1.msra.mxu0 0.0
        %491 = vmatprep.subr.mxu0 0.0
        %492 = vmatpush1.msra.mxu0 0.0
        %493 = vmatprep.subr.mxu0 0.0
        %494 = vmatpush1.msra.mxu0 0.0
        %495 = vmatprep.subr.mxu0 0.0
        %496 = vmatpush1.msra.mxu0 0.0
        %497 = vmatprep.subr.mxu0 0.0
        %498 = vmatpush1.msra.mxu0 0.0
        %499 = vmatprep.subr.mxu0 0.0
        %500 = vmatpush1.msra.mxu0 0.0
        %501 = vmatprep.subr.mxu0 0.0
        %502 = vmatpush1.msra.mxu0 0.0
        %503 = vmatprep.subr.mxu0 0.0
        %504 = vmatpush1.msra.mxu0 0.0
        %505 = vmatprep.subr.mxu0 0.0
        %506 = vmatpush1.msra.mxu0 0.0
        %507 = vmatprep.subr.mxu0 0.0
        %508 = vmatpush1.msra.mxu0 0.0
        %509 = vmatprep.subr.mxu0 0.0
        %510 = vmatpush1.msra.mxu0 0.0
        %511 = vmatprep.subr.mxu0 0.0
        %512 = vmatpush1.msra.mxu0 0.0
        %513 = vmatprep.subr.mxu0 0.0
        %514 = vmatpush1.msra.mxu0 0.0
        %515 = vmatprep.subr.mxu0 0.0
        %516 = vmatpush1.msra.mxu0 0.0
        %517 = vmatprep.subr.mxu0 0.0
        %518 = vmatpush1.msra.mxu0 0.0
        %519 = vmatprep.subr.mxu0 0.0
        %520 = vmatpush1.msra.mxu0 0.0
        %521 = vmatprep.subr.mxu0 0.0
        %522 = vmatpush1.msra.mxu0 0.0
        %523 = vmatprep.subr.mxu0 0.0
        %524 = vmatpush1.msra.mxu0 0.0
        %525 = vmatprep.subr.mxu0 0.0
        %526 = vmatpush1.msra.mxu0 0.0
        %527 = vmatprep.subr.mxu0 0.0
        %528 = vmatpush1.msra.mxu0 0.0
        %529 = vmatprep.subr.mxu0 0.0
        %530 = vmatpush1.msra.mxu0 0.0
        %531 = vmatprep.subr.mxu0 0.0
        %532 = vmatpush1.msra.mxu0 0.0
        %533 = vmatprep.subr.mxu0 0.0
        %534 = vmatpush1.msra.mxu0 0.0
        %535 = vmatprep.subr.mxu0 0.0
        %536 = vmatpush1.msra.mxu0 0.0
        %537 = vmatprep.mubr.f32.mxu0 0.0
        %538 = vmatmul.mubr.f32.gmra.mrb[0].mxu0 %v464
        %v539 = vpop.f32.mrb[0].mxu0
        %v540 = vadd.f32 %v461, %v539
        %v541 = vpop.f32.mrb[0].mxu0
        %542 = vmatprep.mubr.f32.mxu0 0.0
        %543 = vmatmul.mubr.f32.gmra.mrb[0].mxu0 %v467
        %v544 = vpop.f32.mrb[0].mxu0
        %v545 = vadd.f32 %v461, %v544
        %v546 = vpop.f32.mrb[0].mxu0
        %547 = vdwg.mxu0
        %s548 = sld [smem:[#allocation6 + %s458]]
        %v549 = vld [vmem:[%s450] sm:$0xf]
        %v550 = vld [vmem:[%s450 + $0x4] sm:$0xf]
        %v551 = vunpack.c.l.bf16 %v549
        %v552 = vunpack.c.l.bf16 %v550
        %v553 = vstv %s548
        %v554 = vmul.f32 %v553, %v551
        %v555 = vmul.f32 %v553, %v552
        %v556 = vadd.f32 %v540, %v554
        %v557 = vadd.f32 %v545, %v555
        %s558 = sadd.s32 %s458, 1
        %s559 = sld [smem:[#allocation6 + %s558]]
        %s560 = scalar_lea.vmem %s450, 8
        %v561 = vld [vmem:[%s560] sm:$0xf]
        %v562 = vld [vmem:[%s560 + $0x4] sm:$0xf]
        %v563 = vunpack.c.l.bf16 %v561
        %v564 = vunpack.c.l.bf16 %v562
        %v565 = vstv %s559
        %v566 = vmul.f32 %v565, %v563
        %v567 = vmul.f32 %v565, %v564
        %v568 = vadd.f32 %v556, %v566
        %v569 = vadd.f32 %v557, %v567
        %s570 = sadd.s32 %s458, 2
        %s571 = sld [smem:[#allocation6 + %s570]]
        %s572 = scalar_lea.vmem %s450, 16
        %v573 = vld [vmem:[%s572] sm:$0xf]
        %v574 = vld [vmem:[%s572 + $0x4] sm:$0xf]
        %v575 = vunpack.c.l.bf16 %v573
        %v576 = vunpack.c.l.bf16 %v574
        %v577 = vstv %s571
        %v578 = vmul.f32 %v577, %v575
        %v579 = vmul.f32 %v577, %v576
        %v580 = vadd.f32 %v568, %v578
        %v581 = vadd.f32 %v569, %v579
        %s582 = sadd.s32 %s458, 3
        %s583 = sld [smem:[#allocation6 + %s582]]
        %s584 = scalar_lea.vmem %s450, 24
        %v585 = vld [vmem:[%s584] sm:$0xf]
        %v586 = vld [vmem:[%s584 + $0x4] sm:$0xf]
        %v587 = vunpack.c.l.bf16 %v585
        %v588 = vunpack.c.l.bf16 %v586
        %v589 = vstv %s583
        %v590 = vmul.f32 %v589, %v587
        %v591 = vmul.f32 %v589, %v588
        %v592 = vadd.f32 %v580, %v590
        %v593 = vadd.f32 %v581, %v591
        %s594 = sadd.s32 %s458, 4
        %s595 = sld [smem:[#allocation6 + %s594]]
        %s596 = scalar_lea.vmem %s450, 32
        %v597 = vld [vmem:[%s596] sm:$0xf]
        %v598 = vld [vmem:[%s596 + $0x4] sm:$0xf]
        %v599 = vunpack.c.l.bf16 %v597
        %v600 = vunpack.c.l.bf16 %v598
        %v601 = vstv %s595
        %v602 = vmul.f32 %v601, %v599
        %v603 = vmul.f32 %v601, %v600
        %v604 = vadd.f32 %v592, %v602
        %v605 = vadd.f32 %v593, %v603
        %s606 = sadd.s32 %s458, 5
        %s607 = sld [smem:[#allocation6 + %s606]]
        %s608 = scalar_lea.vmem %s450, 40
        %v609 = vld [vmem:[%s608] sm:$0xf]
        %v610 = vld [vmem:[%s608 + $0x4] sm:$0xf]
        %v611 = vunpack.c.l.bf16 %v609
        %v612 = vunpack.c.l.bf16 %v610
        %v613 = vstv %s607
        %v614 = vmul.f32 %v613, %v611
        %v615 = vmul.f32 %v613, %v612
        %v616 = vadd.f32 %v604, %v614
        %v617 = vadd.f32 %v605, %v615
        %s618 = sadd.s32 %s458, 6
        %s619 = sld [smem:[#allocation6 + %s618]]
        %s620 = scalar_lea.vmem %s450, 48
        %v621 = vld [vmem:[%s620] sm:$0xf]
        %v622 = vld [vmem:[%s620 + $0x4] sm:$0xf]
        %v623 = vunpack.c.l.bf16 %v621
        %v624 = vunpack.c.l.bf16 %v622
        %v625 = vstv %s619
        %v626 = vmul.f32 %v625, %v623
        %v627 = vmul.f32 %v625, %v624
        %v628 = vadd.f32 %v616, %v626
        %v629 = vadd.f32 %v617, %v627
        %s630 = sadd.s32 %s458, 7
        %s631 = sld [smem:[#allocation6 + %s630]]
        %s632 = scalar_lea.vmem %s450, 56
        %v633 = vld [vmem:[%s632] sm:$0xf]
        %v634 = vld [vmem:[%s632 + $0x4] sm:$0xf]
        %v635 = vunpack.c.l.bf16 %v633
        %v636 = vunpack.c.l.bf16 %v634
        %v637 = vstv %s631
        %v638 = vmul.f32 %v637, %v635
        %v639 = vmul.f32 %v637, %v636
        %v640 = vadd.f32 %v628, %v638
        %v641 = vadd.f32 %v629, %v639
        %s642 = sadd.s32 %s458, 8
        %s643 = sld [smem:[#allocation6 + %s642]]
        %s644 = scalar_lea.vmem %s450, 64
        %v645 = vld [vmem:[%s644] sm:$0xf]
        %v646 = vld [vmem:[%s644 + $0x4] sm:$0xf]
        %v647 = vunpack.c.l.bf16 %v645
        %v648 = vunpack.c.l.bf16 %v646
        %v649 = vstv %s643
        %v650 = vmul.f32 %v649, %v647
        %v651 = vmul.f32 %v649, %v648
        %v652 = vadd.f32 %v640, %v650
        %v653 = vadd.f32 %v641, %v651
        %s654 = sadd.s32 %s458, 9
        %s655 = sld [smem:[#allocation6 + %s654]]
        %s656 = scalar_lea.vmem %s450, 72
        %v657 = vld [vmem:[%s656] sm:$0xf]
        %v658 = vld [vmem:[%s656 + $0x4] sm:$0xf]
        %v659 = vunpack.c.l.bf16 %v657
        %v660 = vunpack.c.l.bf16 %v658
        %v661 = vstv %s655
        %v662 = vmul.f32 %v661, %v659
        %v663 = vmul.f32 %v661, %v660
        %v664 = vadd.f32 %v652, %v662
        %v665 = vadd.f32 %v653, %v663
        %s666 = sadd.s32 %s458, 10
        %s667 = sld [smem:[#allocation6 + %s666]]
        %s668 = scalar_lea.vmem %s450, 80
        %v669 = vld [vmem:[%s668] sm:$0xf]
        %v670 = vld [vmem:[%s668 + $0x4] sm:$0xf]
        %v671 = vunpack.c.l.bf16 %v669
        %v672 = vunpack.c.l.bf16 %v670
        %v673 = vstv %s667
        %v674 = vmul.f32 %v673, %v671
        %v675 = vmul.f32 %v673, %v672
        %v676 = vadd.f32 %v664, %v674
        %v677 = vadd.f32 %v665, %v675
        %s678 = sadd.s32 %s458, 11
        %s679 = sld [smem:[#allocation6 + %s678]]
        %s680 = scalar_lea.vmem %s450, 88
        %v681 = vld [vmem:[%s680] sm:$0xf]
        %v682 = vld [vmem:[%s680 + $0x4] sm:$0xf]
        %v683 = vunpack.c.l.bf16 %v681
        %v684 = vunpack.c.l.bf16 %v682
        %v685 = vstv %s679
        %v686 = vmul.f32 %v685, %v683
        %v687 = vmul.f32 %v685, %v684
        %v688 = vadd.f32 %v676, %v686
        %v689 = vadd.f32 %v677, %v687
        %s690 = sadd.s32 %s458, 12
        %s691 = sld [smem:[#allocation6 + %s690]]
        %s692 = scalar_lea.vmem %s450, 96
        %v693 = vld [vmem:[%s692] sm:$0xf]
        %v694 = vld [vmem:[%s692 + $0x4] sm:$0xf]
        %v695 = vunpack.c.l.bf16 %v693
        %v696 = vunpack.c.l.bf16 %v694
        %v697 = vstv %s691
        %v698 = vmul.f32 %v697, %v695
        %v699 = vmul.f32 %v697, %v696
        %v700 = vadd.f32 %v688, %v698
        %v701 = vadd.f32 %v689, %v699
        %s702 = sadd.s32 %s458, 13
        %s703 = sld [smem:[#allocation6 + %s702]]
        %s704 = scalar_lea.vmem %s450, 104
        %v705 = vld [vmem:[%s704] sm:$0xf]
        %v706 = vld [vmem:[%s704 + $0x4] sm:$0xf]
        %v707 = vunpack.c.l.bf16 %v705
        %v708 = vunpack.c.l.bf16 %v706
        %v709 = vstv %s703
        %v710 = vmul.f32 %v709, %v707
        %v711 = vmul.f32 %v709, %v708
        %v712 = vadd.f32 %v700, %v710
        %v713 = vadd.f32 %v701, %v711
        %s714 = sadd.s32 %s458, 14
        %s715 = sld [smem:[#allocation6 + %s714]]
        %s716 = scalar_lea.vmem %s450, 112
        %v717 = vld [vmem:[%s716] sm:$0xf]
        %v718 = vld [vmem:[%s716 + $0x4] sm:$0xf]
        %v719 = vunpack.c.l.bf16 %v717
        %v720 = vunpack.c.l.bf16 %v718
        %v721 = vstv %s715
        %v722 = vmul.f32 %v721, %v719
        %v723 = vmul.f32 %v721, %v720
        %v724 = vadd.f32 %v712, %v722
        %v725 = vadd.f32 %v713, %v723
        %s726 = sadd.s32 %s458, 15
        %s727 = sld [smem:[#allocation6 + %s726]]
        %s728 = scalar_lea.vmem %s450, 120
        %v729 = vld [vmem:[%s728] sm:$0xf]
        %v730 = vld [vmem:[%s728 + $0x4] sm:$0xf]
        %v731 = vunpack.c.l.bf16 %v729
        %v732 = vunpack.c.l.bf16 %v730
        %v733 = vstv %s727
        %v734 = vmul.f32 %v733, %v731
        %v735 = vmul.f32 %v733, %v732
        %v736 = vadd.f32 %v724, %v734
        %v737 = vadd.f32 %v725, %v735
        %v738 = vld [vmem:[%s445] sm:$0xff]
        %v739 = vld [vmem:[%s445 + $0x8] sm:$0xff]
        %v740 = vld [vmem:[%s440] sm:$0x1]
        %742 = vset.pattern.permute.xlu0 0
        %743 = vperm.xlu0 %742, %v738
        %v744 = vpop.permute.xlu0 %743
        %747 = vset.pattern.permute.xlu0 0
        %748 = vperm.xlu0 %747, %v739
        %v749 = vpop.permute.xlu0 %748
        %v752 = vlaneseq
        %v753 = vshrl.u32 %v752, 7
        %v754 = vsub.s32 0, %v753
        %v755 = vrot.slane %v740, %v754
        %v757 = vmul.f32 %v744, %v755
        %v758 = vmul.f32 %v749, %v755
        %v759 = vsub.f32 %v757, 1.0
        %v760 = vsub.f32 %v758, 1.0
        %v761 = vmul.f32 %v759, 100000.0
        %v762 = vmul.f32 %v760, 100000.0
        %v763 = vadd.f32 %v736, %v761
        %v764 = vadd.f32 %v737, %v762
        %vm765 = vcmask 130048
        %v766 = vsel %vm765, %v763, -inf
        %767 = vmax.xlane.f32.xlu0 %v766
        %v768 = vpop.xlane.xlu0 %767
        %v769 = vsel %vm765, %v764, -inf
        %770 = vmax.xlane.f32.xlu0 %v769
        %v771 = vpop.xlane.xlu0 %770
        %v772 = vsub.f32 %v763, %v768
        %v773 = vsub.f32 %v764, %v771
        %v774 = vmul.f32 %v772, 1.442695
        %v775 = vpow.pop %v774
        %v776 = vmul.f32 %v773, 1.442695
        %v777 = vpow.pop %v776
        %v778 = vsel %vm765, %v775, 0.0
        %779 = vadd.xlane.f32.xlu0 %v778
        %v780 = vpop.xlane.xlu0 %779
        %v781 = vsel %vm765, %v777, 0.0
        %782 = vadd.xlane.f32.xlu0 %v781
        %v783 = vpop.xlane.xlu0 %782
        %v784 = vrcp.pop %v780
        %v785 = vrcp.pop %v783
        %v786 = vmul.f32 %v775, %v784
        %v787 = vmul.f32 %v777, %v785
        %v788 = vpack.c.bf16 %v787, %v786
        %v789 = vld [vmem:[%s353] sm:$0xf]
        %v790 = vld [vmem:[%s353 + $0x4] sm:$0xf]
        %v793 = vunpack.c.l.b16 %v789
        %v794 = vunpack.c.l.b16 %v790
        %v795 = vpack.c.b16 %v794, %v793
        %v798 = vsel %vm765, %v788, 0
        %800 = vmatprep.subr.bf16.mxu0 0
        %801 = vmatpush1.bf16.msra.mxu0 %v795
        %802 = vmatprep.subr.bf16.mxu0 0
        %803 = vmatpush1.bf16.msra.mxu0 0
        %804 = vmatprep.subr.bf16.mxu0 0
        %805 = vmatpush1.bf16.msra.mxu0 0
        %806 = vmatprep.subr.bf16.mxu0 0
        %807 = vmatpush1.bf16.msra.mxu0 0
        %808 = vmatprep.subr.bf16.mxu0 0
        %809 = vmatpush1.bf16.msra.mxu0 0
        %810 = vmatprep.subr.bf16.mxu0 0
        %811 = vmatpush1.bf16.msra.mxu0 0
        %812 = vmatprep.subr.bf16.mxu0 0
        %813 = vmatpush1.bf16.msra.mxu0 0
        %814 = vmatprep.subr.bf16.mxu0 0
        %815 = vmatpush1.bf16.msra.mxu0 0
        %816 = vmatprep.subr.bf16.mxu0 0
        %817 = vmatpush1.bf16.msra.mxu0 0
        %818 = vmatprep.subr.bf16.mxu0 0
        %819 = vmatpush1.bf16.msra.mxu0 0
        %820 = vmatprep.subr.bf16.mxu0 0
        %821 = vmatpush1.bf16.msra.mxu0 0
        %822 = vmatprep.subr.bf16.mxu0 0
        %823 = vmatpush1.bf16.msra.mxu0 0
        %824 = vmatprep.subr.bf16.mxu0 0
        %825 = vmatpush1.bf16.msra.mxu0 0
        %826 = vmatprep.subr.bf16.mxu0 0
        %827 = vmatpush1.bf16.msra.mxu0 0
        %828 = vmatprep.subr.bf16.mxu0 0
        %829 = vmatpush1.bf16.msra.mxu0 0
        %830 = vmatprep.subr.bf16.mxu0 0
        %831 = vmatpush1.bf16.msra.mxu0 0
        %832 = vmatprep.mubr.bf16.mxu0 0
        %833 = vmatmul.mubr.bf16.gmra.mrb[0].mxu0 %v798
        %v834 = vpop.f32.mrb[0].mxu0
        %v835 = vadd.f32 0.0, %v834
        %v836 = vpop.f32.mrb[0].mxu0
        %v837 = vpop.f32.mrb[0].mxu0
        %v838 = vadd.f32 0.0, %v837
        %v839 = vpop.f32.mrb[0].mxu0
        %840 = vdwg.mxu0
        %v841 = vmul.f32 %v786, %v551
        %v842 = vmul.f32 %v787, %v552
        %v843 = vsel %vm765, %v841, 0.0
        %844 = vadd.xlane.f32.xlu0 %v843
        %v845 = vpop.xlane.xlu0 %844
        %v846 = vsel %vm765, %v842, 0.0
        %847 = vadd.xlane.f32.xlu0 %v846
        %v848 = vpop.xlane.xlu0 %847
        %v849 = vmul.f32 %v786, %v563
        %v850 = vmul.f32 %v787, %v564
        %v851 = vsel %vm765, %v849, 0.0
        %852 = vadd.xlane.f32.xlu0 %v851
        %v853 = vpop.xlane.xlu0 %852
        %v854 = vsel %vm765, %v850, 0.0
        %855 = vadd.xlane.f32.xlu0 %v854
        %v856 = vpop.xlane.xlu0 %855
        %v857 = vmul.f32 %v786, %v575
        %v858 = vmul.f32 %v787, %v576
        %v859 = vsel %vm765, %v857, 0.0
        %860 = vadd.xlane.f32.xlu0 %v859
        %v861 = vpop.xlane.xlu0 %860
        %v862 = vsel %vm765, %v858, 0.0
        %863 = vadd.xlane.f32.xlu0 %v862
        %v864 = vpop.xlane.xlu0 %863
        %v865 = vmul.f32 %v786, %v587
        %v866 = vmul.f32 %v787, %v588
        %v867 = vsel %vm765, %v865, 0.0
        %868 = vadd.xlane.f32.xlu0 %v867
        %v869 = vpop.xlane.xlu0 %868
        %v870 = vsel %vm765, %v866, 0.0
        %871 = vadd.xlane.f32.xlu0 %v870
        %v872 = vpop.xlane.xlu0 %871
        %v873 = vmul.f32 %v786, %v599
        %v874 = vmul.f32 %v787, %v600
        %v875 = vsel %vm765, %v873, 0.0
        %876 = vadd.xlane.f32.xlu0 %v875
        %v877 = vpop.xlane.xlu0 %876
        %v878 = vsel %vm765, %v874, 0.0
        %879 = vadd.xlane.f32.xlu0 %v878
        %v880 = vpop.xlane.xlu0 %879
        %v881 = vmul.f32 %v786, %v611
        %v882 = vmul.f32 %v787, %v612
        %v883 = vsel %vm765, %v881, 0.0
        %884 = vadd.xlane.f32.xlu0 %v883
        %v885 = vpop.xlane.xlu0 %884
        %v886 = vsel %vm765, %v882, 0.0
        %887 = vadd.xlane.f32.xlu0 %v886
        %v888 = vpop.xlane.xlu0 %887
        %v889 = vmul.f32 %v786, %v623
        %v890 = vmul.f32 %v787, %v624
        %v891 = vsel %vm765, %v889, 0.0
        %892 = vadd.xlane.f32.xlu0 %v891
        %v893 = vpop.xlane.xlu0 %892
        %v894 = vsel %vm765, %v890, 0.0
        %895 = vadd.xlane.f32.xlu0 %v894
        %v896 = vpop.xlane.xlu0 %895
        %v897 = vmul.f32 %v786, %v635
        %v898 = vmul.f32 %v787, %v636
        %v899 = vsel %vm765, %v897, 0.0
        %900 = vadd.xlane.f32.xlu0 %v899
        %v901 = vpop.xlane.xlu0 %900
        %v902 = vsel %vm765, %v898, 0.0
        %903 = vadd.xlane.f32.xlu0 %v902
        %v904 = vpop.xlane.xlu0 %903
        %v905 = vmul.f32 %v786, %v647
        %v906 = vmul.f32 %v787, %v648
        %v907 = vsel %vm765, %v905, 0.0
        %908 = vadd.xlane.f32.xlu0 %v907
        %v909 = vpop.xlane.xlu0 %908
        %v910 = vsel %vm765, %v906, 0.0
        %911 = vadd.xlane.f32.xlu0 %v910
        %v912 = vpop.xlane.xlu0 %911
        %v913 = vmul.f32 %v786, %v659
        %v914 = vmul.f32 %v787, %v660
        %v915 = vsel %vm765, %v913, 0.0
        %916 = vadd.xlane.f32.xlu0 %v915
        %v917 = vpop.xlane.xlu0 %916
        %v918 = vsel %vm765, %v914, 0.0
        %919 = vadd.xlane.f32.xlu0 %v918
        %v920 = vpop.xlane.xlu0 %919
        %v921 = vmul.f32 %v786, %v671
        %v922 = vmul.f32 %v787, %v672
        %v923 = vsel %vm765, %v921, 0.0
        %924 = vadd.xlane.f32.xlu0 %v923
        %v925 = vpop.xlane.xlu0 %924
        %v926 = vsel %vm765, %v922, 0.0
        %927 = vadd.xlane.f32.xlu0 %v926
        %v928 = vpop.xlane.xlu0 %927
        %v929 = vmul.f32 %v786, %v683
        %v930 = vmul.f32 %v787, %v684
        %v931 = vsel %vm765, %v929, 0.0
        %932 = vadd.xlane.f32.xlu0 %v931
        %v933 = vpop.xlane.xlu0 %932
        %v934 = vsel %vm765, %v930, 0.0
        %935 = vadd.xlane.f32.xlu0 %v934
        %v936 = vpop.xlane.xlu0 %935
        %v937 = vmul.f32 %v786, %v695
        %v938 = vmul.f32 %v787, %v696
        %v939 = vsel %vm765, %v937, 0.0
        %940 = vadd.xlane.f32.xlu0 %v939
        %v941 = vpop.xlane.xlu0 %940
        %v942 = vsel %vm765, %v938, 0.0
        %943 = vadd.xlane.f32.xlu0 %v942
        %v944 = vpop.xlane.xlu0 %943
        %v945 = vmul.f32 %v786, %v707
        %v946 = vmul.f32 %v787, %v708
        %v947 = vsel %vm765, %v945, 0.0
        %948 = vadd.xlane.f32.xlu0 %v947
        %v949 = vpop.xlane.xlu0 %948
        %v950 = vsel %vm765, %v946, 0.0
        %951 = vadd.xlane.f32.xlu0 %v950
        %v952 = vpop.xlane.xlu0 %951
        %v953 = vmul.f32 %v786, %v719
        %v954 = vmul.f32 %v787, %v720
        %v955 = vsel %vm765, %v953, 0.0
        %956 = vadd.xlane.f32.xlu0 %v955
        %v957 = vpop.xlane.xlu0 %956
        %v958 = vsel %vm765, %v954, 0.0
        %959 = vadd.xlane.f32.xlu0 %v958
        %v960 = vpop.xlane.xlu0 %959
        %v961 = vmul.f32 %v786, %v731
        %v962 = vmul.f32 %v787, %v732
        %v963 = vsel %vm765, %v961, 0.0
        %964 = vadd.xlane.f32.xlu0 %v963
        %v965 = vpop.xlane.xlu0 %964
        %v966 = vsel %vm765, %v962, 0.0
        %967 = vadd.xlane.f32.xlu0 %v966
        %v968 = vpop.xlane.xlu0 %967
        %vm969 = vcmask 7168
        %v970 = vsel %vm969, %v845, %v853
        %v971 = vsel %vm969, %v848, %v856
        %vm972 = vcmask 15360
        %v973 = vsel %vm972, %v970, %v861
        %v974 = vsel %vm972, %v971, %v864
        %vm975 = vcmask 23552
        %v976 = vsel %vm975, %v973, %v869
        %v977 = vsel %vm975, %v974, %v872
        %vm978 = vcmask 31744
        %v979 = vsel %vm978, %v976, %v877
        %v980 = vsel %vm978, %v977, %v880
        %vm981 = vcmask 39936
        %v982 = vsel %vm981, %v979, %v885
        %v983 = vsel %vm981, %v980, %v888
        %vm984 = vcmask 48128
        %v985 = vsel %vm984, %v982, %v893
        %v986 = vsel %vm984, %v983, %v896
        %vm987 = vcmask 56320
        %v988 = vsel %vm987, %v985, %v901
        %v989 = vsel %vm987, %v986, %v904
        %vm990 = vcmask 64512
        %v991 = vsel %vm990, %v988, %v909
        %v992 = vsel %vm990, %v989, %v912
        %vm993 = vcmask 72704
        %v994 = vsel %vm993, %v991, %v917
        %v995 = vsel %vm993, %v992, %v920
        %vm996 = vcmask 80896
        %v997 = vsel %vm996, %v994, %v925
        %v998 = vsel %vm996, %v995, %v928
        %vm999 = vcmask 89088
        %v1000 = vsel %vm999, %v997, %v933
        %v1001 = vsel %vm999, %v998, %v936
        %vm1002 = vcmask 97280
        %v1003 = vsel %vm1002, %v1000, %v941
        %v1004 = vsel %vm1002, %v1001, %v944
        %vm1005 = vcmask 105472
        %v1006 = vsel %vm1005, %v1003, %v949
        %v1007 = vsel %vm1005, %v1004, %v952
        %vm1008 = vcmask 113664
        %v1009 = vsel %vm1008, %v1006, %v957
        %v1010 = vsel %vm1008, %v1007, %v960
        %vm1011 = vcmask 121856
        %v1012 = vsel %vm1011, %v1009, %v965
        %v1013 = vsel %vm1011, %v1010, %v968
        %vm1014 = vcmask 326656
        %1015 = vst.msk [vmem:[%s419] sm:$0xff] %vm1014, %v835
        %1016 = vst.msk [vmem:[%s419 + $0x8] sm:$0xff] %vm1014, %v838
        %1019 = vrot.lane.b32.xlu0 %v1012, 40
        %v1020 = vpop.permute.xlu0 %1019
        %1021 = vrot.lane.b32.xlu0 %v1013, 40
        %v1022 = vpop.permute.xlu0 %1021
        %vm1025 = vcmask 458048
        %1026 = vst.msk [vmem:[%s419] sm:$0xff] %vm1025, %v1020
        %1027 = vst.msk [vmem:[%s419 + $0x8] sm:$0xff] %vm1025, %v1022
        %vm1028 = vcmask 1048000
        %1029 = vst.msk [vmem:[%s419] sm:$0xff] %vm1028, 0.0
        %1030 = vst.msk [vmem:[%s419 + $0x8] sm:$0xff] %vm1028, 0.0
        %s1031 = sand.u32 %s230, 1
        %s1032 = scalar_lea.sflag [#allocation4], %s1031
        %s1033 = sand.u32 %s230, 1
        %s1034 = smul.addr %s1033, 16
        %s1035 = scalar_lea.vmem [#allocation7], %s1034
        // Predicated region
        $region57: #{tpu_custom_call.1} parent=47 // pred_check
          %p1036 = pneg %p240
        $region58: #{tpu_custom_call.1} parent=47 // pred_check_branch
          %1038 = sbr.rel (%p1036) target = $region60
        $region59: #{tpu_custom_call.1} parent=47 // pred_region
          %s1040 = ssub.s32 256, 256
          %1041 = vsyncadd %s1032, %s1040
          %s1042 = smul.addr %s29, 8
          %s1043 = sadd.s32 %s30, %s1042
          %s1044 = smul.addr %s1043, 128
          %s1045 = scalar_lea.hbm %s7, %s1044
          %s1046 = sshll.u32 %s1035, 4
          %s1047 = int_to_ptr.vmem [resolvable:$true] %s1046
          %1052 = dma.vmem_to_hbm [thread:$0]  %s1047, 256, %s1045, %s1032, 128, 512, 8
        $region60: #{tpu_custom_call.1} parent=47 // pred_fallthru
          _
      $region48: #{tpu_custom_call.1} parent=5 // pred_fallthru
        _
      %p1053 = scmp.le.s32.totalorder 2, %s20
      // Predicated region
      $region61: #{tpu_custom_call.1} parent=5 // pred_check
        %p1054 = pneg %p1053
      $region62: #{tpu_custom_call.1} parent=5 // pred_check_branch
        %1056 = sbr.rel (%p1054) target = $region64
      $region63: #{tpu_custom_call.1} parent=5 // pred_region
        %s1057 = ssub.s32 %s20, 2
        // Predicated region
        $region65: #{tpu_custom_call.1} parent=63 // pred_check
          %p1058 = pneg %p246
        $region66: #{tpu_custom_call.1} parent=63 // pred_check_branch
          %1060 = sbr.rel (%p1058) target = $region68
        $region67: #{tpu_custom_call.1} parent=63 // pred_region
          %s1061 = sand.u32 %s231, 1
          %s1062 = scalar_lea.sflag [#allocation4], %s1061
          %s1063 = sand.u32 %s231, 1
          %s1064 = smul.addr %s1063, 16
          %s1065 = scalar_lea.vmem [#allocation7], %s1064
          %1066 = dma.done %s1062, 256
        $region68: #{tpu_custom_call.1} parent=63 // pred_fallthru
          _
      $region64: #{tpu_custom_call.1} parent=5 // pred_fallthru
        _
    $region6: #{tpu_custom_call.1} parent=1 // loop_footer
      %s24 = sadd.s32 1, %s20
    $region7: #{tpu_custom_call.1} parent=1 // loop_footer_branch
      %19 = sbr.rel target = $region3
    $region8: #{tpu_custom_call.1} parent=1 // loop_exit
      _
    %1067 = vsyncpa [#allocation3], 1
    %s1068 = scalar_lea.sflag [#allocation3], 1
    %1069 = vsyncpa %s1068, 1
    %1070 = vsyncpa [#allocation4], 1
    %s1071 = scalar_lea.sflag [#allocation4], 1
    %1072 = vsyncpa %s1071, 1
    %1073 = vsyncpa [#allocation5], 1
    %s1074 = scalar_lea.sflag [#allocation5], 1
    %1075 = vsyncpa %s1074, 1

</llo_original>
